<compile_context>
chip_gen: v7x
topology: tpu7x:2x2x1
jax: 0.10.0
libtpu: 0.0.40
codegen_flags: <defaults>
</compile_context>

<pallas_src>
import functools

import jax
import jax.numpy as jnp
from jax.experimental import pallas as pl
from jax.experimental.pallas import tpu as pltpu


def _round_up(x, m):
    return ((x + m - 1) // m) * m


# ----------------------------------------------------------------------------
# Pallas kernel 1: shifted-tap conv   out = act(bias + sum_t W_t @ x[:, off_t:off_t+L])
# ----------------------------------------------------------------------------
def _tap_conv_kernel(x_ref, w_ref, b_ref, o_ref, *, offsets, relu):
    cout, l_out = o_ref.shape[1], o_ref.shape[2]
    acc = jnp.zeros((cout, l_out), jnp.float32)
    for t, off in enumerate(offsets):           # static, unrolled tap loop
        xs = x_ref[0, :, off:off + l_out]       # (Cin, L) bf16, static VMEM slice
        acc = acc + jnp.dot(w_ref[t], xs, preferred_element_type=jnp.float32)
    acc = acc + b_ref[...]                      # (Cout, 1) broadcasts over lanes
    if relu:
        acc = jnp.maximum(acc, 0.0)
    o_ref[0] = acc


def tap_conv(x_flat, taps_w, bias, offsets, l_wide, relu):
    """x_flat: (B, Cin, Lin) f32, taps_w: (T, Cout, Cin) f32, bias: (Cout,) f32.

    Computes out[b, co, m] = act(bias[co] + sum_t W[t,co,:] . x_flat[b,:,m+off_t])
    for m in [0, round_up(l_wide, 128)).  Returns (B, Cout, l_pad) f32.
    """
    B, cin, lin0 = x_flat.shape
    T, cout, cin2 = taps_w.shape
    assert cin == cin2 and T == len(offsets)
    l_pad = _round_up(l_wide, 128)              # lane-dense output width
    lin_need = l_pad + max(offsets)
    xb = x_flat.astype(jnp.bfloat16)            # bf16 MXU operands, f32 accumulate
    if lin0 < lin_need:
        xb = jnp.pad(xb, ((0, 0), (0, 0), (0, lin_need - lin0)))
    lin = xb.shape[2]
    wb = taps_w.astype(jnp.bfloat16)
    bb = bias.astype(jnp.float32).reshape(cout, 1)

    kernel = functools.partial(
        _tap_conv_kernel, offsets=tuple(int(o) for o in offsets), relu=relu)
    out = pl.pallas_call(
        kernel,
        out_shape=jax.ShapeDtypeStruct((B, cout, l_pad), jnp.float32),
        grid=(B,),
        in_specs=[
            pl.BlockSpec((1, cin, lin), lambda b: (b, 0, 0)),
            pl.BlockSpec((T, cout, cin), lambda b: (0, 0, 0)),   # resident weights
            pl.BlockSpec((cout, 1), lambda b: (0, 0)),           # resident bias
        ],
        out_specs=pl.BlockSpec((1, cout, l_pad), lambda b: (b, 0, 0)),
        compiler_params=pltpu.CompilerParams(
            dimension_semantics=("parallel",),
            vmem_limit_bytes=48 * 1024 * 1024,
        ),
    )(xb, wb, bb)
    return out


# ----------------------------------------------------------------------------
# Conv wrappers (padding / flattening / weight re-layout are JAX glue only)
# ----------------------------------------------------------------------------
def conv2d_same(x, w, b, relu=True):
    """Stride-1 'same' kxk conv, NCHW (also handles 1x1)."""
    B, C, H, W = x.shape
    Cout, Cin, kh, kw = w.shape
    ph, pw = (kh - 1) // 2, (kw - 1) // 2
    xp = jnp.pad(x, ((0, 0), (0, 0), (ph, ph), (pw, pw)))
    Hp, Wp = H + 2 * ph, W + 2 * pw
    x_flat = xp.reshape(B, C, Hp * Wp)
    offsets = [i * Wp + j for i in range(kh) for j in range(kw)]
    taps_w = w.transpose(2, 3, 0, 1).reshape(kh * kw, Cout, Cin)
    l_wide = H * Wp
    out = tap_conv(x_flat, taps_w, b, offsets, l_wide, relu)
    out = out[:, :, :l_wide].reshape(B, Cout, H, Wp)[:, :, :, :W]
    return out


def conv2d_stride2(x, w, b, relu=True):
    """Stride-2 3x3 conv (pad=1), NCHW, via space-to-depth -> stride-1 2x2 conv."""
    B, C, H, W = x.shape
    Cout, Cin, kh, kw = w.shape
    xp = jnp.pad(x, ((0, 0), (0, 0), (1, 1), (1, 1)))
    Hp, Wp = H + 2, W + 2
    if Hp % 2:
        xp = jnp.pad(xp, ((0, 0), (0, 0), (0, 1), (0, 0))); Hp += 1
    if Wp % 2:
        xp = jnp.pad(xp, ((0, 0), (0, 0), (0, 0), (0, 1))); Wp += 1
    Hs, Ws = Hp // 2, Wp // 2
    # space-to-depth: channel index becomes (p*2 + q)*C + c  for phase (p, q)
    xs = xp.reshape(B, C, Hs, 2, Ws, 2).transpose(0, 3, 5, 1, 2, 4)
    xs = xs.reshape(B, 4 * C, Hs, Ws)
    x_flat = xs.reshape(B, 4 * C, Hs * Ws)
    # weights: w[co,ci,2a+p,2b+q] -> taps_w[a*2+b, co, (p*2+q)*Cin+ci]
    wpad = jnp.pad(w, ((0, 0), (0, 0), (0, 4 - kh), (0, 4 - kw)))
    w6 = wpad.reshape(Cout, Cin, 2, 2, 2, 2)               # [co, ci, a, p, b, q]
    taps_w = w6.transpose(2, 4, 0, 3, 5, 1).reshape(4, Cout, 4 * Cin)
    offsets = [a * Ws + bb for a in range(2) for bb in range(2)]
    Ho, Wo = Hs - 1, Ws - 1                                # == H//2, W//2
    l_wide = Ho * Ws
    out = tap_conv(x_flat, taps_w, b, offsets, l_wide, relu)
    out = out[:, :, :l_wide].reshape(B, Cout, Ho, Ws)[:, :, :, :Wo]
    return out


def conv3d_same(x, w, b, relu=True):
    """Stride-1 'same' kxkxk 3-D conv, NCDHW."""
    B, C, D, H, W = x.shape
    Cout, Cin, kd, kh, kw = w.shape
    pd, ph, pw = (kd - 1) // 2, (kh - 1) // 2, (kw - 1) // 2
    xp = jnp.pad(x, ((0, 0), (0, 0), (pd, pd), (ph, ph), (pw, pw)))
    Dp, Hp, Wp = D + 2 * pd, H + 2 * ph, W + 2 * pw
    x_flat = xp.reshape(B, C, Dp * Hp * Wp)
    offsets = [a * Hp * Wp + i * Wp + j
               for a in range(kd) for i in range(kh) for j in range(kw)]
    taps_w = w.transpose(2, 3, 4, 0, 1).reshape(kd * kh * kw, Cout, Cin)
    l_wide = D * Hp * Wp
    out = tap_conv(x_flat, taps_w, b, offsets, l_wide, relu)
    out = out[:, :, :l_wide].reshape(B, Cout, D, Hp, Wp)[:, :, :, :H, :W]
    return out


# ----------------------------------------------------------------------------
# Pallas kernel 2: fused softmax-over-disparity + disparity regression (tiled)
# ----------------------------------------------------------------------------
def _disp_regression_kernel(c_ref, o_ref):
    c = c_ref[0]                                            # (D, T) f32
    m = jnp.max(c, axis=0, keepdims=True)
    e = jnp.exp(c - m)
    d = jax.lax.broadcasted_iota(jnp.float32, (c.shape[0], 1), 0)   # (D, 1)
    num = jnp.sum(e * d, axis=0, keepdims=True)             # (1, T)
    den = jnp.sum(e, axis=0, keepdims=True)                 # (1, T)
    o_ref[0] = num * pl.reciprocal(den, approx=True)


def pallas_disparity_regression(cost, tile_hw=256):
    """cost: (B, D, H, W) f32 -> disparity map (B, H, W) f32."""
    B, D, H, W = cost.shape
    HW = H * W
    HWp = _round_up(HW, tile_hw)
    c = cost.reshape(B, D, HW)
    if HWp != HW:
        c = jnp.pad(c, ((0, 0), (0, 0), (0, HWp - HW)))
    out = pl.pallas_call(
        _disp_regression_kernel,
        out_shape=jax.ShapeDtypeStruct((B, 1, HWp), jnp.float32),
        grid=(B, HWp // tile_hw),
        in_specs=[pl.BlockSpec((1, D, tile_hw), lambda b, t: (b, 0, t))],
        out_specs=pl.BlockSpec((1, 1, tile_hw), lambda b, t: (b, 0, t)),
        compiler_params=pltpu.CompilerParams(
            dimension_semantics=("parallel", "parallel")),
    )(c)
    return out[:, 0, :HW].reshape(B, H, W)


# ----------------------------------------------------------------------------
# Cost-volume construction (pure data movement -> plain JAX glue)
# ----------------------------------------------------------------------------
def build_concat_cost_volume(ref_f, tgt_f, max_disp_q):
    """PSMNet concat cost volume: (B, 2C, D, H, W)."""
    B, C, H, W = ref_f.shape
    vols = []
    for d in range(max_disp_q):
        if d == 0:
            l, r = ref_f, tgt_f
        else:
            zeros = jnp.zeros((B, C, H, d), ref_f.dtype)
            l = jnp.concatenate([zeros, ref_f[:, :, :, d:]], axis=3)
            r = jnp.concatenate([zeros, tgt_f[:, :, :, :W - d]], axis=3)
        vols.append(jnp.concatenate([l, r], axis=1))        # (B, 2C, H, W)
    return jnp.stack(vols, axis=2)                          # (B, 2C, D, H, W)


# ----------------------------------------------------------------------------
# Deterministic parameter construction
# ----------------------------------------------------------------------------
def _init_conv(key, shape):
    fan_in = 1
    for s in shape[1:]:
        fan_in *= s
    w = jax.random.normal(key, shape, jnp.float32) * (2.0 / fan_in) ** 0.5
    b = jnp.zeros((shape[0],), jnp.float32)
    return w, b


def init_params(key, max_disp):
    keys = iter(jax.random.split(key, 32))
    F0, F1, CF, G = 8, 16, 8, 8

    def c2(cout, cin, k):
        return _init_conv(next(keys), (cout, cin, k, k))

    def c3(cout, cin, k=3):
        return _init_conv(next(keys), (cout, cin, k, k, k))

    backbone = {
        'firstconv': [c2(F0, 3, 3), c2(F0, F0, 3), c2(F0, F0, 3)],
        'layer_a': c2(F1, F0, 3),
        'layer_b': c2(F1, F1, 3),
        'lastconv1': c2(F1, F1, 3),
        'lastconv2': c2(CF, F1, 1),
    }
    cost3d = {
        'dres0_a': c3(G, 2 * CF), 'dres0_b': c3(G, G),
        'dres1_a': c3(G, G), 'dres1_b': c3(G, G),
        'classif1_a': c3(G, G), 'classif1_b': c3(1, G),
        'classif2_a': c3(G, G), 'classif2_b': c3(1, G),
        'classif3_a': c3(G, G), 'classif3_b': c3(1, G),
    }
    return {'backbone': backbone, 'cost': cost3d, 'feat_ch': CF}


# ----------------------------------------------------------------------------
# PSMNet forward: Backbone -> CostProcessor -> DispProcessor
# ----------------------------------------------------------------------------
def backbone_forward(p, x):
    w, b = p['firstconv'][0]; x = conv2d_stride2(x, w, b, relu=True)
    w, b = p['firstconv'][1]; x = conv2d_same(x, w, b, relu=True)
    w, b = p['firstconv'][2]; x = conv2d_same(x, w, b, relu=True)
    w, b = p['layer_a'];      x = conv2d_stride2(x, w, b, relu=True)
    w, b = p['layer_b'];      x = conv2d_same(x, w, b, relu=True)
    w, b = p['lastconv1'];    x = conv2d_same(x, w, b, relu=True)
    w, b = p['lastconv2'];    x = conv2d_same(x, w, b, relu=False)   # 1x1
    return x                                                # (B, CF, H/4, W/4)


def cost_processor(p, feat_l, feat_r, max_disp):
    cost = build_concat_cost_volume(feat_l, feat_r, max_disp // 4)
    w, b = p['dres0_a']; c0 = conv3d_same(cost, w, b, relu=True)
    w, b = p['dres0_b']; c0 = conv3d_same(c0, w, b, relu=True)
    w, b = p['dres1_a']; c1 = conv3d_same(c0, w, b, relu=True)
    w, b = p['dres1_b']; c1 = conv3d_same(c1, w, b, relu=False) + c0   # residual

    # fuse the three classif*_a heads (shared input c1) into one Cout=3G conv
    G = p['classif1_a'][0].shape[0]
    wa = jnp.concatenate([p['classif1_a'][0], p['classif2_a'][0],
                          p['classif3_a'][0]], axis=0)
    ba = jnp.concatenate([p['classif1_a'][1], p['classif2_a'][1],
                          p['classif3_a'][1]], axis=0)
    t = conv3d_same(c1, wa, ba, relu=True)                  # (B, 3G, D, H, W)

    # fuse the three 1-channel classif*_b heads into one block-diagonal Cout=3 conv
    ksp = p['classif1_b'][0].shape[2:]
    wbd = jnp.zeros((3, 3 * G) + ksp, jnp.float32)
    wbd = wbd.at[0, 0:G].set(p['classif1_b'][0][0])
    wbd = wbd.at[1, G:2 * G].set(p['classif2_b'][0][0])
    wbd = wbd.at[2, 2 * G:3 * G].set(p['classif3_b'][0][0])
    bbd = jnp.concatenate([p['classif1_b'][1], p['classif2_b'][1],
                           p['classif3_b'][1]], axis=0)
    raw = conv3d_same(t, wbd, bbd, relu=False)              # (B, 3, D/4, H/4, W/4)
    return raw                                              # raw[:, k] = head k


def disp_processor(head_costs, max_disp, H, W):
    # residual accumulation across heads: cost2 = raw2 + cost1, cost3 = raw3 + cost2
    costs = jnp.cumsum(head_costs, axis=1)                  # (B, 3, D/4, H/4, W/4)
    B = costs.shape[0]
    up = jax.image.resize(costs, (B, 3, max_disp, H, W), method='trilinear')
    return [pallas_disparity_regression(up[:, k]) for k in range(3)]


def psmnet_forward(params, inputs, max_disp):
    left = inputs['ref_img']
    right = inputs['tgt_img']
    B, _, H, W = left.shape
    feat_l = backbone_forward(params['backbone'], left)     # shared weights
    feat_r = backbone_forward(params['backbone'], right)
    head_costs = cost_processor(params['cost'], feat_l, feat_r, max_disp)
    disp_out = disp_processor(head_costs, max_disp, H, W)
    return {'disp_pred': disp_out[-1], 'train_preds': disp_out}


# ----------------------------------------------------------------------------
# lax.conv references for a light self-check of the Pallas conv kernels
# ----------------------------------------------------------------------------
def _ref_conv2d(x, w, b, stride, pad, relu):
    y = jax.lax.conv_general_dilated(
        x.astype(jnp.bfloat16), w.astype(jnp.bfloat16),
        window_strides=(stride, stride), padding=[(pad, pad), (pad, pad)],
        dimension_numbers=('NCHW', 'OIHW', 'NCHW'),
        preferred_element_type=jnp.float32)
    y = y + b.reshape(1, -1, 1, 1)
    return jnp.maximum(y, 0.0) if relu else y


def _ref_conv3d(x, w, b, pad, relu):
    y = jax.lax.conv_general_dilated(
        x.astype(jnp.bfloat16), w.astype(jnp.bfloat16),
        window_strides=(1, 1, 1), padding=[(pad, pad)] * 3,
        dimension_numbers=('NCDHW', 'OIDHW', 'NCDHW'),
        preferred_element_type=jnp.float32)
    y = y + b.reshape(1, -1, 1, 1, 1)
    return jnp.maximum(y, 0.0) if relu else y


# ----------------------------------------------------------------------------
if __name__ == "__main__":
    key = jax.random.PRNGKey(0)
    k_left, k_right, k_param = jax.random.split(key, 3)

    B, H, W = 2, 32, 32
    MAX_DISP = 16

    left = jax.random.normal(k_left, (B, 3, H, W), jnp.float32)
    right = jax.random.normal(k_right, (B, 3, H, W), jnp.float32)
    params = init_params(k_param, MAX_DISP)

    # --- light self-check of the Pallas conv kernels against lax.conv ---
    kx, kw2, kw3 = jax.random.split(jax.random.PRNGKey(1), 3)
    xt = jax.random.normal(kx, (2, 8, 16, 16), jnp.float32)
    wt, bt = _init_conv(kw2, (16, 8, 3, 3))
    assert jnp.allclose(conv2d_same(xt, wt, bt, relu=True),
                        _ref_conv2d(xt, wt, bt, 1, 1, True),
                        atol=5e-2, rtol=5e-2)
    assert jnp.allclose(conv2d_stride2(xt, wt, bt, relu=True),
                        _ref_conv2d(xt, wt, bt, 2, 1, True),
                        atol=5e-2, rtol=5e-2)
    x3 = jax.random.normal(kx, (2, 8, 4, 8, 8), jnp.float32)
    w3, b3 = _init_conv(kw3, (8, 8, 3, 3, 3))
    assert jnp.allclose(conv3d_same(x3, w3, b3, relu=True),
                        _ref_conv3d(x3, w3, b3, 1, True),
                        atol=5e-2, rtol=5e-2)

    # --- full forward pass ---
    inputs = {'ref_img': left, 'tgt_img': right}
    fwd = jax.jit(functools.partial(psmnet_forward, max_disp=MAX_DISP))
    out = fwd(params, inputs)

    jax.block_until_ready(out['disp_pred'])
    for p in out['train_preds']:
        jax.block_until_ready(p)

    assert out['disp_pred'].shape == (B, H, W)
    assert len(out['train_preds']) == 3
    assert bool(jnp.all(jnp.isfinite(out['disp_pred'])))
    print("KERNEL_OK")
</pallas_src>

<mosaic_0001>
module attributes {stable_mosaic.version = 11 : i64} {
  func.func @_tap_conv_kernel(%arg0: i32, %arg1: memref<1x8x422xbf16, #tpu.memory_space<vmem>>, %arg2: memref<9x16x8xbf16, #tpu.memory_space<vmem>>, %arg3: memref<16x1xf32, #tpu.memory_space<vmem>>, %arg4: memref<1x16x384xf32, #tpu.memory_space<vmem>>) attributes {dimension_semantics = [#tpu.dimension_semantics<parallel>], iteration_bounds = array<i64: 2>, scalar_prefetch = 0 : i64, scratch_operands = 0 : i64, tpu.core_type = #tpu.core_type<tc>, window_params = [{transform_indices = @transform_0, window_bounds = array<i64: 1, 8, 422>}, {pipeline_mode = #tpu.pipeline_mode<synchronous>, transform_indices = @transform_1, window_bounds = array<i64: 9, 16, 8>}, {pipeline_mode = #tpu.pipeline_mode<synchronous>, transform_indices = @transform_2, window_bounds = array<i64: 16, 1>}, {transform_indices = @transform_3, window_bounds = array<i64: 1, 16, 384>}]} {
    %cst = arith.constant 0.000000e+00 : f32
    %0 = vector.broadcast %cst : f32 to vector<16x384xf32>
    %c0 = arith.constant 0 : index
    %c0_0 = arith.constant 0 : index
    %c0_1 = arith.constant 0 : index
    %1 = vector.load %arg1[%c0, %c0_0, %c0_1] : memref<1x8x422xbf16, #tpu.memory_space<vmem>>, vector<1x8x384xbf16>
    %2 = vector.shape_cast %1 : vector<1x8x384xbf16> to vector<8x384xbf16>
    %c0_2 = arith.constant 0 : index
    %c0_3 = arith.constant 0 : index
    %c0_4 = arith.constant 0 : index
    %3 = vector.load %arg2[%c0_2, %c0_3, %c0_4] : memref<9x16x8xbf16, #tpu.memory_space<vmem>>, vector<1x16x8xbf16>
    %4 = vector.shape_cast %3 : vector<1x16x8xbf16> to vector<16x8xbf16>
    %cst_5 = arith.constant dense<0.000000e+00> : vector<16x384xf32>
    %5 = tpu.matmul %4, %2, %cst_5 {dimension_numbers = #tpu.dot_dimension_numbers<[1], [0], [0], [1], [0, 0, 1, 1], [], []>} : vector<16x8xbf16>, vector<8x384xbf16>, vector<16x384xf32> -> vector<16x384xf32>
    %6 = arith.addf %0, %5 : vector<16x384xf32>
    %c0_6 = arith.constant 0 : index
    %c0_7 = arith.constant 0 : index
    %c1 = arith.constant 1 : index
    %7 = vector.load %arg1[%c0_6, %c0_7, %c1] : memref<1x8x422xbf16, #tpu.memory_space<vmem>>, vector<1x8x384xbf16>
    %8 = vector.shape_cast %7 : vector<1x8x384xbf16> to vector<8x384xbf16>
    %c1_8 = arith.constant 1 : index
    %c0_9 = arith.constant 0 : index
    %c0_10 = arith.constant 0 : index
    %9 = vector.load %arg2[%c1_8, %c0_9, %c0_10] : memref<9x16x8xbf16, #tpu.memory_space<vmem>>, vector<1x16x8xbf16>
    %10 = vector.shape_cast %9 : vector<1x16x8xbf16> to vector<16x8xbf16>
    %cst_11 = arith.constant dense<0.000000e+00> : vector<16x384xf32>
    %11 = tpu.matmul %10, %8, %cst_11 {dimension_numbers = #tpu.dot_dimension_numbers<[1], [0], [0], [1], [0, 0, 1, 1], [], []>} : vector<16x8xbf16>, vector<8x384xbf16>, vector<16x384xf32> -> vector<16x384xf32>
    %12 = arith.addf %6, %11 : vector<16x384xf32>
    %c0_12 = arith.constant 0 : index
    %c0_13 = arith.constant 0 : index
    %c2 = arith.constant 2 : index
    %13 = vector.load %arg1[%c0_12, %c0_13, %c2] : memref<1x8x422xbf16, #tpu.memory_space<vmem>>, vector<1x8x384xbf16>
    %14 = vector.shape_cast %13 : vector<1x8x384xbf16> to vector<8x384xbf16>
    %c2_14 = arith.constant 2 : index
    %c0_15 = arith.constant 0 : index
    %c0_16 = arith.constant 0 : index
    %15 = vector.load %arg2[%c2_14, %c0_15, %c0_16] : memref<9x16x8xbf16, #tpu.memory_space<vmem>>, vector<1x16x8xbf16>
    %16 = vector.shape_cast %15 : vector<1x16x8xbf16> to vector<16x8xbf16>
    %cst_17 = arith.constant dense<0.000000e+00> : vector<16x384xf32>
    %17 = tpu.matmul %16, %14, %cst_17 {dimension_numbers = #tpu.dot_dimension_numbers<[1], [0], [0], [1], [0, 0, 1, 1], [], []>} : vector<16x8xbf16>, vector<8x384xbf16>, vector<16x384xf32> -> vector<16x384xf32>
    %18 = arith.addf %12, %17 : vector<16x384xf32>
    %c0_18 = arith.constant 0 : index
    %c0_19 = arith.constant 0 : index
    %c18 = arith.constant 18 : index
    %19 = vector.load %arg1[%c0_18, %c0_19, %c18] : memref<1x8x422xbf16, #tpu.memory_space<vmem>>, vector<1x8x384xbf16>
    %20 = vector.shape_cast %19 : vector<1x8x384xbf16> to vector<8x384xbf16>
    %c3 = arith.constant 3 : index
    %c0_20 = arith.constant 0 : index
    %c0_21 = arith.constant 0 : index
    %21 = vector.load %arg2[%c3, %c0_20, %c0_21] : memref<9x16x8xbf16, #tpu.memory_space<vmem>>, vector<1x16x8xbf16>
    %22 = vector.shape_cast %21 : vector<1x16x8xbf16> to vector<16x8xbf16>
    %cst_22 = arith.constant dense<0.000000e+00> : vector<16x384xf32>
    %23 = tpu.matmul %22, %20, %cst_22 {dimension_numbers = #tpu.dot_dimension_numbers<[1], [0], [0], [1], [0, 0, 1, 1], [], []>} : vector<16x8xbf16>, vector<8x384xbf16>, vector<16x384xf32> -> vector<16x384xf32>
    %24 = arith.addf %18, %23 : vector<16x384xf32>
    %c0_23 = arith.constant 0 : index
    %c0_24 = arith.constant 0 : index
    %c19 = arith.constant 19 : index
    %25 = vector.load %arg1[%c0_23, %c0_24, %c19] : memref<1x8x422xbf16, #tpu.memory_space<vmem>>, vector<1x8x384xbf16>
    %26 = vector.shape_cast %25 : vector<1x8x384xbf16> to vector<8x384xbf16>
    %c4 = arith.constant 4 : index
    %c0_25 = arith.constant 0 : index
    %c0_26 = arith.constant 0 : index
    %27 = vector.load %arg2[%c4, %c0_25, %c0_26] : memref<9x16x8xbf16, #tpu.memory_space<vmem>>, vector<1x16x8xbf16>
    %28 = vector.shape_cast %27 : vector<1x16x8xbf16> to vector<16x8xbf16>
    %cst_27 = arith.constant dense<0.000000e+00> : vector<16x384xf32>
    %29 = tpu.matmul %28, %26, %cst_27 {dimension_numbers = #tpu.dot_dimension_numbers<[1], [0], [0], [1], [0, 0, 1, 1], [], []>} : vector<16x8xbf16>, vector<8x384xbf16>, vector<16x384xf32> -> vector<16x384xf32>
    %30 = arith.addf %24, %29 : vector<16x384xf32>
    %c0_28 = arith.constant 0 : index
    %c0_29 = arith.constant 0 : index
    %c20 = arith.constant 20 : index
    %31 = vector.load %arg1[%c0_28, %c0_29, %c20] : memref<1x8x422xbf16, #tpu.memory_space<vmem>>, vector<1x8x384xbf16>
    %32 = vector.shape_cast %31 : vector<1x8x384xbf16> to vector<8x384xbf16>
    %c5 = arith.constant 5 : index
    %c0_30 = arith.constant 0 : index
    %c0_31 = arith.constant 0 : index
    %33 = vector.load %arg2[%c5, %c0_30, %c0_31] : memref<9x16x8xbf16, #tpu.memory_space<vmem>>, vector<1x16x8xbf16>
    %34 = vector.shape_cast %33 : vector<1x16x8xbf16> to vector<16x8xbf16>
    %cst_32 = arith.constant dense<0.000000e+00> : vector<16x384xf32>
    %35 = tpu.matmul %34, %32, %cst_32 {dimension_numbers = #tpu.dot_dimension_numbers<[1], [0], [0], [1], [0, 0, 1, 1], [], []>} : vector<16x8xbf16>, vector<8x384xbf16>, vector<16x384xf32> -> vector<16x384xf32>
    %36 = arith.addf %30, %35 : vector<16x384xf32>
    %c0_33 = arith.constant 0 : index
    %c0_34 = arith.constant 0 : index
    %c36 = arith.constant 36 : index
    %37 = vector.load %arg1[%c0_33, %c0_34, %c36] : memref<1x8x422xbf16, #tpu.memory_space<vmem>>, vector<1x8x384xbf16>
    %38 = vector.shape_cast %37 : vector<1x8x384xbf16> to vector<8x384xbf16>
    %c6 = arith.constant 6 : index
    %c0_35 = arith.constant 0 : index
    %c0_36 = arith.constant 0 : index
    %39 = vector.load %arg2[%c6, %c0_35, %c0_36] : memref<9x16x8xbf16, #tpu.memory_space<vmem>>, vector<1x16x8xbf16>
    %40 = vector.shape_cast %39 : vector<1x16x8xbf16> to vector<16x8xbf16>
    %cst_37 = arith.constant dense<0.000000e+00> : vector<16x384xf32>
    %41 = tpu.matmul %40, %38, %cst_37 {dimension_numbers = #tpu.dot_dimension_numbers<[1], [0], [0], [1], [0, 0, 1, 1], [], []>} : vector<16x8xbf16>, vector<8x384xbf16>, vector<16x384xf32> -> vector<16x384xf32>
    %42 = arith.addf %36, %41 : vector<16x384xf32>
    %c0_38 = arith.constant 0 : index
    %c0_39 = arith.constant 0 : index
    %c37 = arith.constant 37 : index
    %43 = vector.load %arg1[%c0_38, %c0_39, %c37] : memref<1x8x422xbf16, #tpu.memory_space<vmem>>, vector<1x8x384xbf16>
    %44 = vector.shape_cast %43 : vector<1x8x384xbf16> to vector<8x384xbf16>
    %c7 = arith.constant 7 : index
    %c0_40 = arith.constant 0 : index
    %c0_41 = arith.constant 0 : index
    %45 = vector.load %arg2[%c7, %c0_40, %c0_41] : memref<9x16x8xbf16, #tpu.memory_space<vmem>>, vector<1x16x8xbf16>
    %46 = vector.shape_cast %45 : vector<1x16x8xbf16> to vector<16x8xbf16>
    %cst_42 = arith.constant dense<0.000000e+00> : vector<16x384xf32>
    %47 = tpu.matmul %46, %44, %cst_42 {dimension_numbers = #tpu.dot_dimension_numbers<[1], [0], [0], [1], [0, 0, 1, 1], [], []>} : vector<16x8xbf16>, vector<8x384xbf16>, vector<16x384xf32> -> vector<16x384xf32>
    %48 = arith.addf %42, %47 : vector<16x384xf32>
    %c0_43 = arith.constant 0 : index
    %c0_44 = arith.constant 0 : index
    %c38 = arith.constant 38 : index
    %49 = vector.load %arg1[%c0_43, %c0_44, %c38] : memref<1x8x422xbf16, #tpu.memory_space<vmem>>, vector<1x8x384xbf16>
    %50 = vector.shape_cast %49 : vector<1x8x384xbf16> to vector<8x384xbf16>
    %c8 = arith.constant 8 : index
    %c0_45 = arith.constant 0 : index
    %c0_46 = arith.constant 0 : index
    %51 = vector.load %arg2[%c8, %c0_45, %c0_46] : memref<9x16x8xbf16, #tpu.memory_space<vmem>>, vector<1x16x8xbf16>
    %52 = vector.shape_cast %51 : vector<1x16x8xbf16> to vector<16x8xbf16>
    %cst_47 = arith.constant dense<0.000000e+00> : vector<16x384xf32>
    %53 = tpu.matmul %52, %50, %cst_47 {dimension_numbers = #tpu.dot_dimension_numbers<[1], [0], [0], [1], [0, 0, 1, 1], [], []>} : vector<16x8xbf16>, vector<8x384xbf16>, vector<16x384xf32> -> vector<16x384xf32>
    %54 = arith.addf %48, %53 : vector<16x384xf32>
    %c0_48 = arith.constant 0 : index
    %c0_49 = arith.constant 0 : index
    %55 = vector.load %arg3[%c0_48, %c0_49] : memref<16x1xf32, #tpu.memory_space<vmem>>, vector<16x1xf32>
    %56 = vector.broadcast %55 : vector<16x1xf32> to vector<16x384xf32>
    %57 = arith.addf %54, %56 : vector<16x384xf32>
    %cst_50 = arith.constant 0.000000e+00 : f32
    %58 = vector.broadcast %cst_50 : f32 to vector<16x384xf32>
    %59 = arith.maximumf %57, %58 : vector<16x384xf32>
    %c0_51 = arith.constant 0 : index
    %c0_52 = arith.constant 0 : index
    %c0_53 = arith.constant 0 : index
    %60 = vector.load %arg4[%c0_51, %c0_52, %c0_53] : memref<1x16x384xf32, #tpu.memory_space<vmem>>, vector<1x16x384xf32>
    %61 = vector.shape_cast %60 : vector<1x16x384xf32> to vector<16x384xf32>
    %62 = vector.shape_cast %59 : vector<16x384xf32> to vector<1x16x384xf32>
    tpu.vector_store %arg4[%c0_51, %c0_52, %c0_53], %62 {strides = array<i32>} : memref<1x16x384xf32, #tpu.memory_space<vmem>>, vector<1x16x384xf32>,
    return
  }
  func.func @transform_0(%arg0: i32) -> (i32, i32, i32) {
    %c0_i32 = arith.constant 0 : i32
    %c0_i32_0 = arith.constant 0 : i32
    %c0_i32_1 = arith.constant 0 : i32
    return %arg0, %c0_i32, %c0_i32_0 : i32, i32, i32
  }
  func.func @transform_1(%arg0: i32) -> (i32, i32, i32) {
    %c0_i32 = arith.constant 0 : i32
    %c0_i32_0 = arith.constant 0 : i32
    %c0_i32_1 = arith.constant 0 : i32
    %c0_i32_2 = arith.constant 0 : i32
    return %c0_i32, %c0_i32_0, %c0_i32_1 : i32, i32, i32
  }
  func.func @transform_2(%arg0: i32) -> (i32, i32) {
    %c0_i32 = arith.constant 0 : i32
    %c0_i32_0 = arith.constant 0 : i32
    %c0_i32_1 = arith.constant 0 : i32
    return %c0_i32, %c0_i32_0 : i32, i32
  }
  func.func @transform_3(%arg0: i32) -> (i32, i32, i32) {
    %c0_i32 = arith.constant 0 : i32
    %c0_i32_0 = arith.constant 0 : i32
    %c0_i32_1 = arith.constant 0 : i32
    return %arg0, %c0_i32, %c0_i32_0 : i32, i32, i32
  }
}

</mosaic_0001>

<llo_original>
// kernel: tpu_custom_call.1
$region0: #{tpu_custom_call.1}
  #allocation0 [shape = 'u32[]', space=smem, size = 0x4, offset = 0x4, fixed_abs, tag = 'smem constant byte address 0x4 - core index']
  #allocation1 [shape = 'u32[144,128]{1,0:T(1,128)}', space=vmem, size = 0x12000, scoped, tag = 'internal scratch']
  %s0 = inlined_call_operand.vmem [shape: bf16[2,8,422], index: 0, kind: input, shape index: {}]
  %s1 = inlined_call_operand.vmem [shape: bf16[9,16,8], index: 1, kind: input, shape index: {}]
  %s2 = inlined_call_operand.vmem [shape: f32[16,1], index: 2, kind: input, shape index: {}]
  %s3 = inlined_call_operand.hbm [shape: f32[2,16,384], index: 3, kind: output, shape index: {}]
  %s4 = sld [smem:[#allocation0]]
  $region45: #{tpu_custom_call.1} parent=0
    _
  %s6 = ssub.s32 1, %s4
  %s7 = scalar_select 0, %s6, %s4
  $region1: #{tpu_custom_call.1} parent=0
    #allocation2 [shape = 'u8[49152]{0}', space=vmem, size = 0xc000, scoped, tag = 'output window, operand 0']
    #allocation3 [shape = 's32[2]{0}', space=sflag, size = 0x8, scoped, tag = 'scoped memory for tpu_custom_call.1']
    %8 = vsyncpa [#allocation3], 0
    %s9 = scalar_lea.sflag [#allocation3], 1
    %10 = vsyncpa %s9, 0
    loop: start=0, step=1, limit=4
    $region2: #{tpu_custom_call.1} parent=1 // loop_pre_header
      _
    $region3: #{tpu_custom_call.1} parent=1 // loop_header
      %s12 = sphi 0, %s16
      %p13 = scmp.ge.s32.totalorder %s12, 4
      %s22 = sphi 0, %s24
      %s25 = sphi 0, %s22
      %s26 = sphi 0, %s25
      %s42 = sphi 0, %s26
      %s46 = sphi 0, %s46
      %s48 = sphi 0, %s46
      %s49 = sphi 0, %s48
      %s63 = sphi 0, %s49
      %s67 = sphi 0, %s67
      %s69 = sphi 0, %s67
      %s70 = sphi 0, %s69
      %s84 = sphi 0, %s70
      %s90 = sphi 0, %s92
      %s93 = sphi 0, %s90
      %s94 = sphi 0, %s93
      %s110 = sphi 0, %s94
    $region4: #{tpu_custom_call.1} parent=1 // loop_header_branch
      %15 = sbr.rel (%p13) target = $region8
    $region5: #{tpu_custom_call.1} parent=1 // loop_body
      %s17 = ssub.s32 %s12, 1
      %s18 = ssub.s32 %s12, 2
      %s19 = sadd.s32 %s12, 1
      %s20 = ssub.s32 %s12, %s19
      %p21 = scmp.eq.s32.totalorder %s20, 0
      %s23 = sadd.s32 %s22, 1
      %s24 = scalar_select %p21, %s22, %s23
      %p27 = pneg %p21
      %p28 = scmp.eq.s32.totalorder %s12, 1
      %p29 = por %p27, %p28
      %p30 = scmp.ne.s32.totalorder %s22, %s25
      %p31 = scmp.eq.s32.totalorder %s12, 0
      %p32 = por %p30, %p31
      %p33 = scmp.ne.s32.totalorder %s22, %s25
      %p34 = scmp.eq.s32.totalorder %s17, 1
      %p35 = por %p33, %p34
      %p36 = scmp.ne.s32.totalorder %s25, %s26
      %p37 = scmp.eq.s32.totalorder %s17, 0
      %p38 = por %p36, %p37
      %p39 = scmp.ne.s32.totalorder %s25, %s26
      %p40 = scmp.eq.s32.totalorder %s18, 1
      %p41 = por %p39, %p40
      %p43 = scmp.ne.s32.totalorder %s26, %s42
      %p44 = scmp.eq.s32.totalorder %s18, 0
      %p45 = por %p43, %p44
      %s47 = sadd.s32 %s46, 1
      %p50 = scmp.eq.s32.totalorder %s12, 1
      %p51 = scmp.ne.s32.totalorder %s46, %s48
      %p52 = scmp.eq.s32.totalorder %s12, 0
      %p53 = por %p51, %p52
      %p54 = scmp.ne.s32.totalorder %s46, %s48
      %p55 = scmp.eq.s32.totalorder %s17, 1
      %p56 = por %p54, %p55
      %p57 = scmp.ne.s32.totalorder %s48, %s49
      %p58 = scmp.eq.s32.totalorder %s17, 0
      %p59 = por %p57, %p58
      %p60 = scmp.ne.s32.totalorder %s48, %s49
      %p61 = scmp.eq.s32.totalorder %s18, 1
      %p62 = por %p60, %p61
      %p64 = scmp.ne.s32.totalorder %s49, %s63
      %p65 = scmp.eq.s32.totalorder %s18, 0
      %p66 = por %p64, %p65
      %s68 = sadd.s32 %s67, 1
      %p71 = scmp.eq.s32.totalorder %s12, 1
      %p72 = scmp.ne.s32.totalorder %s67, %s69
      %p73 = scmp.eq.s32.totalorder %s12, 0
      %p74 = por %p72, %p73
      %p75 = scmp.ne.s32.totalorder %s67, %s69
      %p76 = scmp.eq.s32.totalorder %s17, 1
      %p77 = por %p75, %p76
      %p78 = scmp.ne.s32.totalorder %s69, %s70
      %p79 = scmp.eq.s32.totalorder %s17, 0
      %p80 = por %p78, %p79
      %p81 = scmp.ne.s32.totalorder %s69, %s70
      %p82 = scmp.eq.s32.totalorder %s18, 1
      %p83 = por %p81, %p82
      %p85 = scmp.ne.s32.totalorder %s70, %s84
      %p86 = scmp.eq.s32.totalorder %s18, 0
      %p87 = por %p85, %p86
      %s88 = ssub.s32 %s12, %s19
      %p89 = scmp.eq.s32.totalorder %s88, 0
      %s91 = sadd.s32 %s90, 1
      %s92 = scalar_select %p89, %s90, %s91
      %p95 = pneg %p89
      %p96 = scmp.eq.s32.totalorder %s12, 1
      %p97 = por %p95, %p96
      %p98 = scmp.ne.s32.totalorder %s90, %s93
      %p99 = scmp.eq.s32.totalorder %s12, 0
      %p100 = por %p98, %p99
      %p101 = scmp.ne.s32.totalorder %s90, %s93
      %p102 = scmp.eq.s32.totalorder %s17, 1
      %p103 = por %p101, %p102
      %p104 = scmp.ne.s32.totalorder %s93, %s94
      %p105 = scmp.eq.s32.totalorder %s17, 0
      %p106 = por %p104, %p105
      %p107 = scmp.ne.s32.totalorder %s93, %s94
      %p108 = scmp.eq.s32.totalorder %s18, 1
      %p109 = por %p107, %p108
      %p111 = scmp.ne.s32.totalorder %s94, %s110
      %p112 = scmp.eq.s32.totalorder %s18, 0
      %p113 = por %p111, %p112
      %p114 = scmp.le.s32.totalorder 1, %s12
      %p115 = scmp.lt.s32.totalorder %s12, 3
      %p116 = pnand %p114, %p115
      %p117 = pneg %p116
      // Predicated region
      $region9: #{tpu_custom_call.1} parent=5 // pred_check
        _
      $region10: #{tpu_custom_call.1} parent=5 // pred_check_branch
        %119 = sbr.rel (%p116) target = $region12
      $region11: #{tpu_custom_call.1} parent=5 // pred_region
        %s120 = ssub.s32 %s12, 1
        // Predicated region
        $region13: #{tpu_custom_call.1} parent=11 // pred_check
          %p121 = pneg %p59
        $region14: #{tpu_custom_call.1} parent=11 // pred_check_branch
          %123 = sbr.rel (%p121) target = $region16
        $region15: #{tpu_custom_call.1} parent=11 // pred_region
          _
        $region16: #{tpu_custom_call.1} parent=11 // pred_fallthru
          _
        // Predicated region
        $region17: #{tpu_custom_call.1} parent=11 // pred_check
          %p124 = pneg %p80
        $region18: #{tpu_custom_call.1} parent=11 // pred_check_branch
          %126 = sbr.rel (%p124) target = $region20
        $region19: #{tpu_custom_call.1} parent=11 // pred_region
          _
        $region20: #{tpu_custom_call.1} parent=11 // pred_fallthru
          _
      $region12: #{tpu_custom_call.1} parent=5 // pred_fallthru
        _
      %p127 = scmp.lt.s32.totalorder %s12, 2
      // Predicated region
      $region21: #{tpu_custom_call.1} parent=5 // pred_check
        %p128 = pneg %p127
      $region22: #{tpu_custom_call.1} parent=5 // pred_check_branch
        %130 = sbr.rel (%p128) target = $region24
      $region23: #{tpu_custom_call.1} parent=5 // pred_region
        // Predicated region
        $region25: #{tpu_custom_call.1} parent=23 // pred_check
          %p131 = pneg %p32
        $region26: #{tpu_custom_call.1} parent=23 // pred_check_branch
          %133 = sbr.rel (%p131) target = $region28
        $region27: #{tpu_custom_call.1} parent=23 // pred_region
          %p134 = scmp.lt.s32.totalorder %s12, 1
          %s135 = scalar_select %p134, %s12, 1
          %s136 = smul.addr %s135, 4
          %s137 = smul.addr %s136, 4
          %s138 = scalar_lea.vmem %s0, %s137
        $region28: #{tpu_custom_call.1} parent=23 // pred_fallthru
          _
      $region24: #{tpu_custom_call.1} parent=5 // pred_fallthru
        _
      %p139 = scmp.le.s32.totalorder 1, %s12
      %p140 = scmp.lt.s32.totalorder %s12, 3
      %p141 = pnand %p139, %p140
      %p142 = pneg %p141
      // Predicated region
      $region29: #{tpu_custom_call.1} parent=5 // pred_check
        _
      $region30: #{tpu_custom_call.1} parent=5 // pred_check_branch
        %144 = sbr.rel (%p141) target = $region32
      $region31: #{tpu_custom_call.1} parent=5 // pred_region
        %s145 = ssub.s32 %s12, 1
        %p146 = scmp.lt.s32.totalorder %s17, 1
        %s147 = scalar_select %p146, %s17, 1
        %s148 = smul.addr %s147, 4
        %s149 = smul.addr %s148, 4
        %s150 = scalar_lea.vmem %s0, %s149
        %p151 = pneg %p38
        %p152 = pneg %p35
        %p153 = pneg %p59
        %p154 = pneg %p56
        %p155 = pneg %p80
        %p156 = pneg %p77
        %p157 = pneg %p106
        %p158 = pneg %p103
        %s159 = sand.u32 %s93, 1
        %s160 = scalar_lea.sflag [#allocation3], %s159
        %s161 = sand.u32 %s93, 1
        %s162 = smul.addr %s161, 48
        %s163 = scalar_lea.vmem [#allocation2], %s162
        %p164 = scmp.lt.s32.totalorder %s17, 1
        %s165 = scalar_select %p164, %s17, 1
        %s166 = smul.addr %s165, 4
        %s167 = smul.addr %s166, 4
        %s168 = scalar_lea.vmem %s0, %s167
        %v170 = vld [vmem:[%s168] sm:$0xff]
        %v171 = vld [vmem:[%s168 + $0x8] sm:$0xf]
        %v172 = vld [vmem:[%s1] sm:$0xf]
        %v173 = vld [vmem:[%s1 + $0x4] sm:$0xf]
        %v174 = vld [vmem:[%s168 + $0x8] sm:$0xff]
        %s175 = scalar_lea.vmem %s1, 8
        %v176 = vld [vmem:[%s175] sm:$0xf]
        %v177 = vld [vmem:[%s175 + $0x4] sm:$0xf]
        %v180 = vunpack.c.l.b16 %v176
        %v181 = vunpack.c.l.b16 %v177
        %v182 = vpack.c.b16 %v181, %v180
        %v185 = vunpack.c.l.b16 %v170
        %v186 = vunpack.c.h.b16 %v170
        %v187 = vunpack.c.l.b16 %v174
        %v188 = vunpack.c.h.b16 %v174
        %v189 = vpack.c.b16 %v185, %v185
        %v190 = vpack.c.b16 %v186, %v186
        %v191 = vpack.c.b16 %v187, %v187
        %v192 = vpack.c.b16 %v188, %v188
        %193 = vrot.lane.b32.xlu0 %v189, 127
        %v194 = vpop.permute.xlu0 %193
        %195 = vrot.lane.b32.xlu0 %v190, 127
        %v196 = vpop.permute.xlu0 %195
        %197 = vrot.lane.b32.xlu0 %v191, 127
        %v198 = vpop.permute.xlu0 %197
        %199 = vrot.lane.b32.xlu0 %v192, 127
        %v200 = vpop.permute.xlu0 %199
        %vm201 = vcmask 1039360
        %v202 = vsel %vm201, %v194, %v196
        %v203 = vsel %vm201, %v196, %v198
        %v204 = vsel %vm201, %v198, %v200
        %vm205 = vcmask 64512
        %v207 = vsel %vm205, %v182, 0
        %vm209 = vcmask 1043456
        %v211 = vsel %vm209, %v202, 0
        %v214 = vsel %vm209, %v203, 0
        %v217 = vsel %vm209, %v204, 0
        %219 = vmatprep.subr.bf16.mxu0 %v214
        %220 = vmatpush1.bf16.msra.mxu0 %v211
        %221 = vmatprep.subr.bf16.mxu0 0
        %222 = vmatpush1.bf16.msra.mxu0 0
        %223 = vmatprep.subr.bf16.mxu0 0
        %224 = vmatpush1.bf16.msra.mxu0 0
        %225 = vmatprep.subr.bf16.mxu0 0
        %226 = vmatpush1.bf16.msra.mxu0 0
        %227 = vmatprep.subr.bf16.mxu0 0
        %228 = vmatpush1.bf16.msra.mxu0 0
        %229 = vmatprep.subr.bf16.mxu0 0
        %230 = vmatpush1.bf16.msra.mxu0 0
        %231 = vmatprep.subr.bf16.mxu0 0
        %232 = vmatpush1.bf16.msra.mxu0 0
        %233 = vmatprep.subr.bf16.mxu0 0
        %234 = vmatpush1.bf16.msra.mxu0 0
        %235 = vmatprep.subr.bf16.mxu0 0
        %236 = vmatpush1.bf16.msra.mxu0 0
        %237 = vmatprep.subr.bf16.mxu0 0
        %238 = vmatpush1.bf16.msra.mxu0 0
        %239 = vmatprep.subr.bf16.mxu0 0
        %240 = vmatpush1.bf16.msra.mxu0 0
        %241 = vmatprep.subr.bf16.mxu0 0
        %242 = vmatpush1.bf16.msra.mxu0 0
        %243 = vmatprep.subr.bf16.mxu0 0
        %244 = vmatpush1.bf16.msra.mxu0 0
        %245 = vmatprep.subr.bf16.mxu0 0
        %246 = vmatpush1.bf16.msra.mxu0 0
        %247 = vmatprep.subr.bf16.mxu0 0
        %248 = vmatpush1.bf16.msra.mxu0 0
        %249 = vmatprep.subr.bf16.mxu0 0
        %250 = vmatpush1.bf16.msra.mxu0 0
        %251 = vmatprep.mubr.bf16.mxu0 0
        %252 = vmatmul.mubr.bf16.gmra.mrb[0].mxu0 %v207
        %v253 = vpop.f32.mrb[0].mxu0
        %v254 = vadd.f32 0.0, %v253
        %v255 = vpop.f32.mrb[0].mxu0
        %v256 = vadd.f32 0.0, %v255
        %v257 = vpop.f32.mrb[0].mxu0
        %v258 = vadd.f32 0.0, %v257
        %v259 = vpop.f32.mrb[0].mxu0
        %v260 = vadd.f32 0.0, %v259
        %261 = vdwg.mxu0
        %262 = vmatprep.subr.bf16.mxu0 0
        %263 = vmatpush1.bf16.msra.mxu0 %v217
        %264 = vmatprep.subr.bf16.mxu0 0
        %265 = vmatpush1.bf16.msra.mxu0 0
        %266 = vmatprep.subr.bf16.mxu0 0
        %267 = vmatpush1.bf16.msra.mxu0 0
        %268 = vmatprep.subr.bf16.mxu0 0
        %269 = vmatpush1.bf16.msra.mxu0 0
        %270 = vmatprep.subr.bf16.mxu0 0
        %271 = vmatpush1.bf16.msra.mxu0 0
        %272 = vmatprep.subr.bf16.mxu0 0
        %273 = vmatpush1.bf16.msra.mxu0 0
        %274 = vmatprep.subr.bf16.mxu0 0
        %275 = vmatpush1.bf16.msra.mxu0 0
        %276 = vmatprep.subr.bf16.mxu0 0
        %277 = vmatpush1.bf16.msra.mxu0 0
        %278 = vmatprep.subr.bf16.mxu0 0
        %279 = vmatpush1.bf16.msra.mxu0 0
        %280 = vmatprep.subr.bf16.mxu0 0
        %281 = vmatpush1.bf16.msra.mxu0 0
        %282 = vmatprep.subr.bf16.mxu0 0
        %283 = vmatpush1.bf16.msra.mxu0 0
        %284 = vmatprep.subr.bf16.mxu0 0
        %285 = vmatpush1.bf16.msra.mxu0 0
        %286 = vmatprep.subr.bf16.mxu0 0
        %287 = vmatpush1.bf16.msra.mxu0 0
        %288 = vmatprep.subr.bf16.mxu0 0
        %289 = vmatpush1.bf16.msra.mxu0 0
        %290 = vmatprep.subr.bf16.mxu0 0
        %291 = vmatpush1.bf16.msra.mxu0 0
        %292 = vmatprep.subr.bf16.mxu0 0
        %293 = vmatpush1.bf16.msra.mxu0 0
        %294 = vmatprep.mubr.bf16.mxu0 0
        %295 = vmatmul.mubr.bf16.gmra.mrb[0].mxu0 %v207
        %v296 = vpop.f32.mrb[0].mxu0
        %v297 = vadd.f32 0.0, %v296
        %v298 = vpop.f32.mrb[0].mxu0
        %v299 = vpop.f32.mrb[0].mxu0
        %v300 = vadd.f32 0.0, %v299
        %v301 = vpop.f32.mrb[0].mxu0
        %302 = vdwg.mxu0
        %v305 = vunpack.c.l.b16 %v172
        %v306 = vunpack.c.l.b16 %v173
        %v307 = vpack.c.b16 %v306, %v305
        %v309 = vunpack.c.l.b16 %v171
        %v310 = vpack.c.b16 %v309, %v309
        %v312 = vsel %vm205, %v307, 0
        %v315 = vsel %vm209, %v189, 0
        %v318 = vsel %vm209, %v190, 0
        %v321 = vsel %vm209, %v310, 0
        %323 = vmatprep.subr.bf16.mxu0 %v318
        %324 = vmatpush1.bf16.msra.mxu0 %v315
        %325 = vmatprep.subr.bf16.mxu0 0
        %326 = vmatpush1.bf16.msra.mxu0 0
        %327 = vmatprep.subr.bf16.mxu0 0
        %328 = vmatpush1.bf16.msra.mxu0 0
        %329 = vmatprep.subr.bf16.mxu0 0
        %330 = vmatpush1.bf16.msra.mxu0 0
        %331 = vmatprep.subr.bf16.mxu0 0
        %332 = vmatpush1.bf16.msra.mxu0 0
        %333 = vmatprep.subr.bf16.mxu0 0
        %334 = vmatpush1.bf16.msra.mxu0 0
        %335 = vmatprep.subr.bf16.mxu0 0
        %336 = vmatpush1.bf16.msra.mxu0 0
        %337 = vmatprep.subr.bf16.mxu0 0
        %338 = vmatpush1.bf16.msra.mxu0 0
        %339 = vmatprep.subr.bf16.mxu0 0
        %340 = vmatpush1.bf16.msra.mxu0 0
        %341 = vmatprep.subr.bf16.mxu0 0
        %342 = vmatpush1.bf16.msra.mxu0 0
        %343 = vmatprep.subr.bf16.mxu0 0
        %344 = vmatpush1.bf16.msra.mxu0 0
        %345 = vmatprep.subr.bf16.mxu0 0
        %346 = vmatpush1.bf16.msra.mxu0 0
        %347 = vmatprep.subr.bf16.mxu0 0
        %348 = vmatpush1.bf16.msra.mxu0 0
        %349 = vmatprep.subr.bf16.mxu0 0
        %350 = vmatpush1.bf16.msra.mxu0 0
        %351 = vmatprep.subr.bf16.mxu0 0
        %352 = vmatpush1.bf16.msra.mxu0 0
        %353 = vmatprep.subr.bf16.mxu0 0
        %354 = vmatpush1.bf16.msra.mxu0 0
        %355 = vmatprep.mubr.bf16.mxu0 0
        %356 = vmatmul.mubr.bf16.gmra.mrb[0].mxu0 %v312
        %v357 = vpop.f32.mrb[0].mxu0
        %v358 = vadd.f32 %v254, %v357
        %v359 = vpop.f32.mrb[0].mxu0
        %v360 = vadd.f32 %v256, %v359
        %v361 = vpop.f32.mrb[0].mxu0
        %v362 = vadd.f32 %v258, %v361
        %v363 = vpop.f32.mrb[0].mxu0
        %v364 = vadd.f32 %v260, %v363
        %365 = vdwg.mxu0
        %366 = vmatprep.subr.bf16.mxu0 0
        %367 = vmatpush1.bf16.msra.mxu0 %v321
        %368 = vmatprep.subr.bf16.mxu0 0
        %369 = vmatpush1.bf16.msra.mxu0 0
        %370 = vmatprep.subr.bf16.mxu0 0
        %371 = vmatpush1.bf16.msra.mxu0 0
        %372 = vmatprep.subr.bf16.mxu0 0
        %373 = vmatpush1.bf16.msra.mxu0 0
        %374 = vmatprep.subr.bf16.mxu0 0
        %375 = vmatpush1.bf16.msra.mxu0 0
        %376 = vmatprep.subr.bf16.mxu0 0
        %377 = vmatpush1.bf16.msra.mxu0 0
        %378 = vmatprep.subr.bf16.mxu0 0
        %379 = vmatpush1.bf16.msra.mxu0 0
        %380 = vmatprep.subr.bf16.mxu0 0
        %381 = vmatpush1.bf16.msra.mxu0 0
        %382 = vmatprep.subr.bf16.mxu0 0
        %383 = vmatpush1.bf16.msra.mxu0 0
        %384 = vmatprep.subr.bf16.mxu0 0
        %385 = vmatpush1.bf16.msra.mxu0 0
        %386 = vmatprep.subr.bf16.mxu0 0
        %387 = vmatpush1.bf16.msra.mxu0 0
        %388 = vmatprep.subr.bf16.mxu0 0
        %389 = vmatpush1.bf16.msra.mxu0 0
        %390 = vmatprep.subr.bf16.mxu0 0
        %391 = vmatpush1.bf16.msra.mxu0 0
        %392 = vmatprep.subr.bf16.mxu0 0
        %393 = vmatpush1.bf16.msra.mxu0 0
        %394 = vmatprep.subr.bf16.mxu0 0
        %395 = vmatpush1.bf16.msra.mxu0 0
        %396 = vmatprep.subr.bf16.mxu0 0
        %397 = vmatpush1.bf16.msra.mxu0 0
        %398 = vmatprep.mubr.bf16.mxu0 0
        %399 = vmatmul.mubr.bf16.gmra.mrb[0].mxu0 %v312
        %v400 = vpop.f32.mrb[0].mxu0
        %v401 = vadd.f32 %v297, %v400
        %v402 = vpop.f32.mrb[0].mxu0
        %v403 = vpop.f32.mrb[0].mxu0
        %v404 = vadd.f32 %v300, %v403
        %v405 = vpop.f32.mrb[0].mxu0
        %406 = vdwg.mxu0
        %s407 = scalar_lea.vmem %s1, 16
        %v408 = vld [vmem:[%s407] sm:$0xf]
        %v409 = vld [vmem:[%s407 + $0x4] sm:$0xf]
        %v412 = vunpack.c.l.b16 %v408
        %v413 = vunpack.c.l.b16 %v409
        %v414 = vpack.c.b16 %v413, %v412
        %415 = vrot.lane.b32.xlu0 %v189, 126
        %v416 = vpop.permute.xlu0 %415
        %417 = vrot.lane.b32.xlu0 %v190, 126
        %v418 = vpop.permute.xlu0 %417
        %419 = vrot.lane.b32.xlu0 %v191, 126
        %v420 = vpop.permute.xlu0 %419
        %421 = vrot.lane.b32.xlu0 %v192, 126
        %v422 = vpop.permute.xlu0 %421
        %vm423 = vcmask 1031168
        %v424 = vsel %vm423, %v416, %v418
        %v425 = vsel %vm423, %v418, %v420
        %v426 = vsel %vm423, %v420, %v422
        %v428 = vsel %vm205, %v414, 0
        %v431 = vsel %vm209, %v424, 0
        %v434 = vsel %vm209, %v425, 0
        %v437 = vsel %vm209, %v426, 0
        %439 = vmatprep.subr.bf16.mxu0 %v434
        %440 = vmatpush1.bf16.msra.mxu0 %v431
        %441 = vmatprep.subr.bf16.mxu0 0
        %442 = vmatpush1.bf16.msra.mxu0 0
        %443 = vmatprep.subr.bf16.mxu0 0
        %444 = vmatpush1.bf16.msra.mxu0 0
        %445 = vmatprep.subr.bf16.mxu0 0
        %446 = vmatpush1.bf16.msra.mxu0 0
        %447 = vmatprep.subr.bf16.mxu0 0
        %448 = vmatpush1.bf16.msra.mxu0 0
        %449 = vmatprep.subr.bf16.mxu0 0
        %450 = vmatpush1.bf16.msra.mxu0 0
        %451 = vmatprep.subr.bf16.mxu0 0
        %452 = vmatpush1.bf16.msra.mxu0 0
        %453 = vmatprep.subr.bf16.mxu0 0
        %454 = vmatpush1.bf16.msra.mxu0 0
        %455 = vmatprep.subr.bf16.mxu0 0
        %456 = vmatpush1.bf16.msra.mxu0 0
        %457 = vmatprep.subr.bf16.mxu0 0
        %458 = vmatpush1.bf16.msra.mxu0 0
        %459 = vmatprep.subr.bf16.mxu0 0
        %460 = vmatpush1.bf16.msra.mxu0 0
        %461 = vmatprep.subr.bf16.mxu0 0
        %462 = vmatpush1.bf16.msra.mxu0 0
        %463 = vmatprep.subr.bf16.mxu0 0
        %464 = vmatpush1.bf16.msra.mxu0 0
        %465 = vmatprep.subr.bf16.mxu0 0
        %466 = vmatpush1.bf16.msra.mxu0 0
        %467 = vmatprep.subr.bf16.mxu0 0
        %468 = vmatpush1.bf16.msra.mxu0 0
        %469 = vmatprep.subr.bf16.mxu0 0
        %470 = vmatpush1.bf16.msra.mxu0 0
        %471 = vmatprep.mubr.bf16.mxu0 0
        %472 = vmatmul.mubr.bf16.gmra.mrb[0].mxu0 %v428
        %v473 = vpop.f32.mrb[0].mxu0
        %v474 = vadd.f32 0.0, %v473
        %v475 = vpop.f32.mrb[0].mxu0
        %v476 = vadd.f32 0.0, %v475
        %v477 = vpop.f32.mrb[0].mxu0
        %v478 = vadd.f32 0.0, %v477
        %v479 = vpop.f32.mrb[0].mxu0
        %v480 = vadd.f32 0.0, %v479
        %481 = vdwg.mxu0
        %482 = vmatprep.subr.bf16.mxu0 0
        %483 = vmatpush1.bf16.msra.mxu0 %v437
        %484 = vmatprep.subr.bf16.mxu0 0
        %485 = vmatpush1.bf16.msra.mxu0 0
        %486 = vmatprep.subr.bf16.mxu0 0
        %487 = vmatpush1.bf16.msra.mxu0 0
        %488 = vmatprep.subr.bf16.mxu0 0
        %489 = vmatpush1.bf16.msra.mxu0 0
        %490 = vmatprep.subr.bf16.mxu0 0
        %491 = vmatpush1.bf16.msra.mxu0 0
        %492 = vmatprep.subr.bf16.mxu0 0
        %493 = vmatpush1.bf16.msra.mxu0 0
        %494 = vmatprep.subr.bf16.mxu0 0
        %495 = vmatpush1.bf16.msra.mxu0 0
        %496 = vmatprep.subr.bf16.mxu0 0
        %497 = vmatpush1.bf16.msra.mxu0 0
        %498 = vmatprep.subr.bf16.mxu0 0
        %499 = vmatpush1.bf16.msra.mxu0 0
        %500 = vmatprep.subr.bf16.mxu0 0
        %501 = vmatpush1.bf16.msra.mxu0 0
        %502 = vmatprep.subr.bf16.mxu0 0
        %503 = vmatpush1.bf16.msra.mxu0 0
        %504 = vmatprep.subr.bf16.mxu0 0
        %505 = vmatpush1.bf16.msra.mxu0 0
        %506 = vmatprep.subr.bf16.mxu0 0
        %507 = vmatpush1.bf16.msra.mxu0 0
        %508 = vmatprep.subr.bf16.mxu0 0
        %509 = vmatpush1.bf16.msra.mxu0 0
        %510 = vmatprep.subr.bf16.mxu0 0
        %511 = vmatpush1.bf16.msra.mxu0 0
        %512 = vmatprep.subr.bf16.mxu0 0
        %513 = vmatpush1.bf16.msra.mxu0 0
        %514 = vmatprep.mubr.bf16.mxu0 0
        %515 = vmatmul.mubr.bf16.gmra.mrb[0].mxu0 %v428
        %v516 = vpop.f32.mrb[0].mxu0
        %v517 = vadd.f32 0.0, %v516
        %v518 = vpop.f32.mrb[0].mxu0
        %v519 = vpop.f32.mrb[0].mxu0
        %v520 = vadd.f32 0.0, %v519
        %v521 = vpop.f32.mrb[0].mxu0
        %522 = vdwg.mxu0
        %v523 = vadd.f32 %v358, %v474
        %v524 = vadd.f32 %v360, %v476
        %v525 = vadd.f32 %v401, %v517
        %v526 = vadd.f32 %v362, %v478
        %v527 = vadd.f32 %v364, %v480
        %v528 = vadd.f32 %v404, %v520
        %s529 = scalar_lea.vmem %s1, 24
        %v530 = vld [vmem:[%s529] sm:$0xf]
        %v531 = vld [vmem:[%s529 + $0x4] sm:$0xf]
        %v534 = vunpack.c.l.b16 %v530
        %v535 = vunpack.c.l.b16 %v531
        %v536 = vpack.c.b16 %v535, %v534
        %537 = vrot.lane.b32.xlu0 %v189, 110
        %v538 = vpop.permute.xlu0 %537
        %539 = vrot.lane.b32.xlu0 %v190, 110
        %v540 = vpop.permute.xlu0 %539
        %541 = vrot.lane.b32.xlu0 %v191, 110
        %v542 = vpop.permute.xlu0 %541
        %543 = vrot.lane.b32.xlu0 %v192, 110
        %v544 = vpop.permute.xlu0 %543
        %vm545 = vcmask 900096
        %v546 = vsel %vm545, %v538, %v540
        %v547 = vsel %vm545, %v540, %v542
        %v548 = vsel %vm545, %v542, %v544
        %v550 = vsel %vm205, %v536, 0
        %v553 = vsel %vm209, %v546, 0
        %v556 = vsel %vm209, %v547, 0
        %v559 = vsel %vm209, %v548, 0
        %561 = vmatprep.subr.bf16.mxu0 %v556
        %562 = vmatpush1.bf16.msra.mxu0 %v553
        %563 = vmatprep.subr.bf16.mxu0 0
        %564 = vmatpush1.bf16.msra.mxu0 0
        %565 = vmatprep.subr.bf16.mxu0 0
        %566 = vmatpush1.bf16.msra.mxu0 0
        %567 = vmatprep.subr.bf16.mxu0 0
        %568 = vmatpush1.bf16.msra.mxu0 0
        %569 = vmatprep.subr.bf16.mxu0 0
        %570 = vmatpush1.bf16.msra.mxu0 0
        %571 = vmatprep.subr.bf16.mxu0 0
        %572 = vmatpush1.bf16.msra.mxu0 0
        %573 = vmatprep.subr.bf16.mxu0 0
        %574 = vmatpush1.bf16.msra.mxu0 0
        %575 = vmatprep.subr.bf16.mxu0 0
        %576 = vmatpush1.bf16.msra.mxu0 0
        %577 = vmatprep.subr.bf16.mxu0 0
        %578 = vmatpush1.bf16.msra.mxu0 0
        %579 = vmatprep.subr.bf16.mxu0 0
        %580 = vmatpush1.bf16.msra.mxu0 0
        %581 = vmatprep.subr.bf16.mxu0 0
        %582 = vmatpush1.bf16.msra.mxu0 0
        %583 = vmatprep.subr.bf16.mxu0 0
        %584 = vmatpush1.bf16.msra.mxu0 0
        %585 = vmatprep.subr.bf16.mxu0 0
        %586 = vmatpush1.bf16.msra.mxu0 0
        %587 = vmatprep.subr.bf16.mxu0 0
        %588 = vmatpush1.bf16.msra.mxu0 0
        %589 = vmatprep.subr.bf16.mxu0 0
        %590 = vmatpush1.bf16.msra.mxu0 0
        %591 = vmatprep.subr.bf16.mxu0 0
        %592 = vmatpush1.bf16.msra.mxu0 0
        %593 = vmatprep.mubr.bf16.mxu0 0
        %594 = vmatmul.mubr.bf16.gmra.mrb[0].mxu0 %v550
        %v595 = vpop.f32.mrb[0].mxu0
        %v596 = vadd.f32 0.0, %v595
        %v597 = vpop.f32.mrb[0].mxu0
        %v598 = vadd.f32 0.0, %v597
        %v599 = vpop.f32.mrb[0].mxu0
        %v600 = vadd.f32 0.0, %v599
        %v601 = vpop.f32.mrb[0].mxu0
        %v602 = vadd.f32 0.0, %v601
        %603 = vdwg.mxu0
        %604 = vmatprep.subr.bf16.mxu0 0
        %605 = vmatpush1.bf16.msra.mxu0 %v559
        %606 = vmatprep.subr.bf16.mxu0 0
        %607 = vmatpush1.bf16.msra.mxu0 0
        %608 = vmatprep.subr.bf16.mxu0 0
        %609 = vmatpush1.bf16.msra.mxu0 0
        %610 = vmatprep.subr.bf16.mxu0 0
        %611 = vmatpush1.bf16.msra.mxu0 0
        %612 = vmatprep.subr.bf16.mxu0 0
        %613 = vmatpush1.bf16.msra.mxu0 0
        %614 = vmatprep.subr.bf16.mxu0 0
        %615 = vmatpush1.bf16.msra.mxu0 0
        %616 = vmatprep.subr.bf16.mxu0 0
        %617 = vmatpush1.bf16.msra.mxu0 0
        %618 = vmatprep.subr.bf16.mxu0 0
        %619 = vmatpush1.bf16.msra.mxu0 0
        %620 = vmatprep.subr.bf16.mxu0 0
        %621 = vmatpush1.bf16.msra.mxu0 0
        %622 = vmatprep.subr.bf16.mxu0 0
        %623 = vmatpush1.bf16.msra.mxu0 0
        %624 = vmatprep.subr.bf16.mxu0 0
        %625 = vmatpush1.bf16.msra.mxu0 0
        %626 = vmatprep.subr.bf16.mxu0 0
        %627 = vmatpush1.bf16.msra.mxu0 0
        %628 = vmatprep.subr.bf16.mxu0 0
        %629 = vmatpush1.bf16.msra.mxu0 0
        %630 = vmatprep.subr.bf16.mxu0 0
        %631 = vmatpush1.bf16.msra.mxu0 0
        %632 = vmatprep.subr.bf16.mxu0 0
        %633 = vmatpush1.bf16.msra.mxu0 0
        %634 = vmatprep.subr.bf16.mxu0 0
        %635 = vmatpush1.bf16.msra.mxu0 0
        %636 = vmatprep.mubr.bf16.mxu0 0
        %637 = vmatmul.mubr.bf16.gmra.mrb[0].mxu0 %v550
        %v638 = vpop.f32.mrb[0].mxu0
        %v639 = vadd.f32 0.0, %v638
        %v640 = vpop.f32.mrb[0].mxu0
        %v641 = vpop.f32.mrb[0].mxu0
        %v642 = vadd.f32 0.0, %v641
        %v643 = vpop.f32.mrb[0].mxu0
        %644 = vdwg.mxu0
        %v645 = vadd.f32 %v523, %v596
        %v646 = vadd.f32 %v524, %v598
        %v647 = vadd.f32 %v525, %v639
        %v648 = vadd.f32 %v526, %v600
        %v649 = vadd.f32 %v527, %v602
        %v650 = vadd.f32 %v528, %v642
        %s651 = scalar_lea.vmem %s1, 32
        %v652 = vld [vmem:[%s651] sm:$0xf]
        %v653 = vld [vmem:[%s651 + $0x4] sm:$0xf]
        %v656 = vunpack.c.l.b16 %v652
        %v657 = vunpack.c.l.b16 %v653
        %v658 = vpack.c.b16 %v657, %v656
        %659 = vrot.lane.b32.xlu0 %v189, 109
        %v660 = vpop.permute.xlu0 %659
        %661 = vrot.lane.b32.xlu0 %v190, 109
        %v662 = vpop.permute.xlu0 %661
        %663 = vrot.lane.b32.xlu0 %v191, 109
        %v664 = vpop.permute.xlu0 %663
        %665 = vrot.lane.b32.xlu0 %v192, 109
        %v666 = vpop.permute.xlu0 %665
        %vm667 = vcmask 891904
        %v668 = vsel %vm667, %v660, %v662
        %v669 = vsel %vm667, %v662, %v664
        %v670 = vsel %vm667, %v664, %v666
        %v672 = vsel %vm205, %v658, 0
        %v675 = vsel %vm209, %v668, 0
        %v678 = vsel %vm209, %v669, 0
        %v681 = vsel %vm209, %v670, 0
        %683 = vmatprep.subr.bf16.mxu0 %v678
        %684 = vmatpush1.bf16.msra.mxu0 %v675
        %685 = vmatprep.subr.bf16.mxu0 0
        %686 = vmatpush1.bf16.msra.mxu0 0
        %687 = vmatprep.subr.bf16.mxu0 0
        %688 = vmatpush1.bf16.msra.mxu0 0
        %689 = vmatprep.subr.bf16.mxu0 0
        %690 = vmatpush1.bf16.msra.mxu0 0
        %691 = vmatprep.subr.bf16.mxu0 0
        %692 = vmatpush1.bf16.msra.mxu0 0
        %693 = vmatprep.subr.bf16.mxu0 0
        %694 = vmatpush1.bf16.msra.mxu0 0
        %695 = vmatprep.subr.bf16.mxu0 0
        %696 = vmatpush1.bf16.msra.mxu0 0
        %697 = vmatprep.subr.bf16.mxu0 0
        %698 = vmatpush1.bf16.msra.mxu0 0
        %699 = vmatprep.subr.bf16.mxu0 0
        %700 = vmatpush1.bf16.msra.mxu0 0
        %701 = vmatprep.subr.bf16.mxu0 0
        %702 = vmatpush1.bf16.msra.mxu0 0
        %703 = vmatprep.subr.bf16.mxu0 0
        %704 = vmatpush1.bf16.msra.mxu0 0
        %705 = vmatprep.subr.bf16.mxu0 0
        %706 = vmatpush1.bf16.msra.mxu0 0
        %707 = vmatprep.subr.bf16.mxu0 0
        %708 = vmatpush1.bf16.msra.mxu0 0
        %709 = vmatprep.subr.bf16.mxu0 0
        %710 = vmatpush1.bf16.msra.mxu0 0
        %711 = vmatprep.subr.bf16.mxu0 0
        %712 = vmatpush1.bf16.msra.mxu0 0
        %713 = vmatprep.subr.bf16.mxu0 0
        %714 = vmatpush1.bf16.msra.mxu0 0
        %715 = vmatprep.mubr.bf16.mxu0 0
        %716 = vmatmul.mubr.bf16.gmra.mrb[0].mxu0 %v672
        %v717 = vpop.f32.mrb[0].mxu0
        %v718 = vadd.f32 0.0, %v717
        %v719 = vpop.f32.mrb[0].mxu0
        %v720 = vadd.f32 0.0, %v719
        %v721 = vpop.f32.mrb[0].mxu0
        %v722 = vadd.f32 0.0, %v721
        %v723 = vpop.f32.mrb[0].mxu0
        %v724 = vadd.f32 0.0, %v723
        %725 = vdwg.mxu0
        %726 = vmatprep.subr.bf16.mxu0 0
        %727 = vmatpush1.bf16.msra.mxu0 %v681
        %728 = vmatprep.subr.bf16.mxu0 0
        %729 = vmatpush1.bf16.msra.mxu0 0
        %730 = vmatprep.subr.bf16.mxu0 0
        %731 = vmatpush1.bf16.msra.mxu0 0
        %732 = vmatprep.subr.bf16.mxu0 0
        %733 = vmatpush1.bf16.msra.mxu0 0
        %734 = vmatprep.subr.bf16.mxu0 0
        %735 = vmatpush1.bf16.msra.mxu0 0
        %736 = vmatprep.subr.bf16.mxu0 0
        %737 = vmatpush1.bf16.msra.mxu0 0
        %738 = vmatprep.subr.bf16.mxu0 0
        %739 = vmatpush1.bf16.msra.mxu0 0
        %740 = vmatprep.subr.bf16.mxu0 0
        %741 = vmatpush1.bf16.msra.mxu0 0
        %742 = vmatprep.subr.bf16.mxu0 0
        %743 = vmatpush1.bf16.msra.mxu0 0
        %744 = vmatprep.subr.bf16.mxu0 0
        %745 = vmatpush1.bf16.msra.mxu0 0
        %746 = vmatprep.subr.bf16.mxu0 0
        %747 = vmatpush1.bf16.msra.mxu0 0
        %748 = vmatprep.subr.bf16.mxu0 0
        %749 = vmatpush1.bf16.msra.mxu0 0
        %750 = vmatprep.subr.bf16.mxu0 0
        %751 = vmatpush1.bf16.msra.mxu0 0
        %752 = vmatprep.subr.bf16.mxu0 0
        %753 = vmatpush1.bf16.msra.mxu0 0
        %754 = vmatprep.subr.bf16.mxu0 0
        %755 = vmatpush1.bf16.msra.mxu0 0
        %756 = vmatprep.subr.bf16.mxu0 0
        %757 = vmatpush1.bf16.msra.mxu0 0
        %758 = vmatprep.mubr.bf16.mxu0 0
        %759 = vmatmul.mubr.bf16.gmra.mrb[0].mxu0 %v672
        %v760 = vpop.f32.mrb[0].mxu0
        %v761 = vadd.f32 0.0, %v760
        %v762 = vpop.f32.mrb[0].mxu0
        %v763 = vpop.f32.mrb[0].mxu0
        %v764 = vadd.f32 0.0, %v763
        %v765 = vpop.f32.mrb[0].mxu0
        %766 = vdwg.mxu0
        %v767 = vadd.f32 %v645, %v718
        %v768 = vadd.f32 %v646, %v720
        %v769 = vadd.f32 %v647, %v761
        %v770 = vadd.f32 %v648, %v722
        %v771 = vadd.f32 %v649, %v724
        %v772 = vadd.f32 %v650, %v764
        %s773 = scalar_lea.vmem %s1, 40
        %v774 = vld [vmem:[%s773] sm:$0xf]
        %v775 = vld [vmem:[%s773 + $0x4] sm:$0xf]
        %v778 = vunpack.c.l.b16 %v774
        %v779 = vunpack.c.l.b16 %v775
        %v780 = vpack.c.b16 %v779, %v778
        %781 = vrot.lane.b32.xlu0 %v189, 108
        %v782 = vpop.permute.xlu0 %781
        %783 = vrot.lane.b32.xlu0 %v190, 108
        %v784 = vpop.permute.xlu0 %783
        %785 = vrot.lane.b32.xlu0 %v191, 108
        %v786 = vpop.permute.xlu0 %785
        %787 = vrot.lane.b32.xlu0 %v192, 108
        %v788 = vpop.permute.xlu0 %787
        %vm789 = vcmask 883712
        %v790 = vsel %vm789, %v782, %v784
        %v791 = vsel %vm789, %v784, %v786
        %v792 = vsel %vm789, %v786, %v788
        %v794 = vsel %vm205, %v780, 0
        %v797 = vsel %vm209, %v790, 0
        %v800 = vsel %vm209, %v791, 0
        %v803 = vsel %vm209, %v792, 0
        %805 = vmatprep.subr.bf16.mxu0 %v800
        %806 = vmatpush1.bf16.msra.mxu0 %v797
        %807 = vmatprep.subr.bf16.mxu0 0
        %808 = vmatpush1.bf16.msra.mxu0 0
        %809 = vmatprep.subr.bf16.mxu0 0
        %810 = vmatpush1.bf16.msra.mxu0 0
        %811 = vmatprep.subr.bf16.mxu0 0
        %812 = vmatpush1.bf16.msra.mxu0 0
        %813 = vmatprep.subr.bf16.mxu0 0
        %814 = vmatpush1.bf16.msra.mxu0 0
        %815 = vmatprep.subr.bf16.mxu0 0
        %816 = vmatpush1.bf16.msra.mxu0 0
        %817 = vmatprep.subr.bf16.mxu0 0
        %818 = vmatpush1.bf16.msra.mxu0 0
        %819 = vmatprep.subr.bf16.mxu0 0
        %820 = vmatpush1.bf16.msra.mxu0 0
        %821 = vmatprep.subr.bf16.mxu0 0
        %822 = vmatpush1.bf16.msra.mxu0 0
        %823 = vmatprep.subr.bf16.mxu0 0
        %824 = vmatpush1.bf16.msra.mxu0 0
        %825 = vmatprep.subr.bf16.mxu0 0
        %826 = vmatpush1.bf16.msra.mxu0 0
        %827 = vmatprep.subr.bf16.mxu0 0
        %828 = vmatpush1.bf16.msra.mxu0 0
        %829 = vmatprep.subr.bf16.mxu0 0
        %830 = vmatpush1.bf16.msra.mxu0 0
        %831 = vmatprep.subr.bf16.mxu0 0
        %832 = vmatpush1.bf16.msra.mxu0 0
        %833 = vmatprep.subr.bf16.mxu0 0
        %834 = vmatpush1.bf16.msra.mxu0 0
        %835 = vmatprep.subr.bf16.mxu0 0
        %836 = vmatpush1.bf16.msra.mxu0 0
        %837 = vmatprep.mubr.bf16.mxu0 0
        %838 = vmatmul.mubr.bf16.gmra.mrb[0].mxu0 %v794
        %v839 = vpop.f32.mrb[0].mxu0
        %v840 = vadd.f32 0.0, %v839
        %v841 = vpop.f32.mrb[0].mxu0
        %v842 = vadd.f32 0.0, %v841
        %v843 = vpop.f32.mrb[0].mxu0
        %v844 = vadd.f32 0.0, %v843
        %v845 = vpop.f32.mrb[0].mxu0
        %v846 = vadd.f32 0.0, %v845
        %847 = vdwg.mxu0
        %848 = vmatprep.subr.bf16.mxu0 0
        %849 = vmatpush1.bf16.msra.mxu0 %v803
        %850 = vmatprep.subr.bf16.mxu0 0
        %851 = vmatpush1.bf16.msra.mxu0 0
        %852 = vmatprep.subr.bf16.mxu0 0
        %853 = vmatpush1.bf16.msra.mxu0 0
        %854 = vmatprep.subr.bf16.mxu0 0
        %855 = vmatpush1.bf16.msra.mxu0 0
        %856 = vmatprep.subr.bf16.mxu0 0
        %857 = vmatpush1.bf16.msra.mxu0 0
        %858 = vmatprep.subr.bf16.mxu0 0
        %859 = vmatpush1.bf16.msra.mxu0 0
        %860 = vmatprep.subr.bf16.mxu0 0
        %861 = vmatpush1.bf16.msra.mxu0 0
        %862 = vmatprep.subr.bf16.mxu0 0
        %863 = vmatpush1.bf16.msra.mxu0 0
        %864 = vmatprep.subr.bf16.mxu0 0
        %865 = vmatpush1.bf16.msra.mxu0 0
        %866 = vmatprep.subr.bf16.mxu0 0
        %867 = vmatpush1.bf16.msra.mxu0 0
        %868 = vmatprep.subr.bf16.mxu0 0
        %869 = vmatpush1.bf16.msra.mxu0 0
        %870 = vmatprep.subr.bf16.mxu0 0
        %871 = vmatpush1.bf16.msra.mxu0 0
        %872 = vmatprep.subr.bf16.mxu0 0
        %873 = vmatpush1.bf16.msra.mxu0 0
        %874 = vmatprep.subr.bf16.mxu0 0
        %875 = vmatpush1.bf16.msra.mxu0 0
        %876 = vmatprep.subr.bf16.mxu0 0
        %877 = vmatpush1.bf16.msra.mxu0 0
        %878 = vmatprep.subr.bf16.mxu0 0
        %879 = vmatpush1.bf16.msra.mxu0 0
        %880 = vmatprep.mubr.bf16.mxu0 0
        %881 = vmatmul.mubr.bf16.gmra.mrb[0].mxu0 %v794
        %v882 = vpop.f32.mrb[0].mxu0
        %v883 = vadd.f32 0.0, %v882
        %v884 = vpop.f32.mrb[0].mxu0
        %v885 = vpop.f32.mrb[0].mxu0
        %v886 = vadd.f32 0.0, %v885
        %v887 = vpop.f32.mrb[0].mxu0
        %888 = vdwg.mxu0
        %v889 = vadd.f32 %v767, %v840
        %v890 = vadd.f32 %v768, %v842
        %v891 = vadd.f32 %v769, %v883
        %v892 = vadd.f32 %v770, %v844
        %v893 = vadd.f32 %v771, %v846
        %v894 = vadd.f32 %v772, %v886
        %s895 = scalar_lea.vmem %s1, 48
        %v896 = vld [vmem:[%s895] sm:$0xf]
        %v897 = vld [vmem:[%s895 + $0x4] sm:$0xf]
        %v900 = vunpack.c.l.b16 %v896
        %v901 = vunpack.c.l.b16 %v897
        %v902 = vpack.c.b16 %v901, %v900
        %903 = vrot.lane.b32.xlu0 %v189, 92
        %v904 = vpop.permute.xlu0 %903
        %905 = vrot.lane.b32.xlu0 %v190, 92
        %v906 = vpop.permute.xlu0 %905
        %907 = vrot.lane.b32.xlu0 %v191, 92
        %v908 = vpop.permute.xlu0 %907
        %909 = vrot.lane.b32.xlu0 %v192, 92
        %v910 = vpop.permute.xlu0 %909
        %vm911 = vcmask 752640
        %v912 = vsel %vm911, %v904, %v906
        %v913 = vsel %vm911, %v906, %v908
        %v914 = vsel %vm911, %v908, %v910
        %v916 = vsel %vm205, %v902, 0
        %v919 = vsel %vm209, %v912, 0
        %v922 = vsel %vm209, %v913, 0
        %v925 = vsel %vm209, %v914, 0
        %927 = vmatprep.subr.bf16.mxu0 %v922
        %928 = vmatpush1.bf16.msra.mxu0 %v919
        %929 = vmatprep.subr.bf16.mxu0 0
        %930 = vmatpush1.bf16.msra.mxu0 0
        %931 = vmatprep.subr.bf16.mxu0 0
        %932 = vmatpush1.bf16.msra.mxu0 0
        %933 = vmatprep.subr.bf16.mxu0 0
        %934 = vmatpush1.bf16.msra.mxu0 0
        %935 = vmatprep.subr.bf16.mxu0 0
        %936 = vmatpush1.bf16.msra.mxu0 0
        %937 = vmatprep.subr.bf16.mxu0 0
        %938 = vmatpush1.bf16.msra.mxu0 0
        %939 = vmatprep.subr.bf16.mxu0 0
        %940 = vmatpush1.bf16.msra.mxu0 0
        %941 = vmatprep.subr.bf16.mxu0 0
        %942 = vmatpush1.bf16.msra.mxu0 0
        %943 = vmatprep.subr.bf16.mxu0 0
        %944 = vmatpush1.bf16.msra.mxu0 0
        %945 = vmatprep.subr.bf16.mxu0 0
        %946 = vmatpush1.bf16.msra.mxu0 0
        %947 = vmatprep.subr.bf16.mxu0 0
        %948 = vmatpush1.bf16.msra.mxu0 0
        %949 = vmatprep.subr.bf16.mxu0 0
        %950 = vmatpush1.bf16.msra.mxu0 0
        %951 = vmatprep.subr.bf16.mxu0 0
        %952 = vmatpush1.bf16.msra.mxu0 0
        %953 = vmatprep.subr.bf16.mxu0 0
        %954 = vmatpush1.bf16.msra.mxu0 0
        %955 = vmatprep.subr.bf16.mxu0 0
        %956 = vmatpush1.bf16.msra.mxu0 0
        %957 = vmatprep.subr.bf16.mxu0 0
        %958 = vmatpush1.bf16.msra.mxu0 0
        %959 = vmatprep.mubr.bf16.mxu0 0
        %960 = vmatmul.mubr.bf16.gmra.mrb[0].mxu0 %v916
        %v961 = vpop.f32.mrb[0].mxu0
        %v962 = vadd.f32 0.0, %v961
        %v963 = vpop.f32.mrb[0].mxu0
        %v964 = vadd.f32 0.0, %v963
        %v965 = vpop.f32.mrb[0].mxu0
        %v966 = vadd.f32 0.0, %v965
        %v967 = vpop.f32.mrb[0].mxu0
        %v968 = vadd.f32 0.0, %v967
        %969 = vdwg.mxu0
        %970 = vmatprep.subr.bf16.mxu0 0
        %971 = vmatpush1.bf16.msra.mxu0 %v925
        %972 = vmatprep.subr.bf16.mxu0 0
        %973 = vmatpush1.bf16.msra.mxu0 0
        %974 = vmatprep.subr.bf16.mxu0 0
        %975 = vmatpush1.bf16.msra.mxu0 0
        %976 = vmatprep.subr.bf16.mxu0 0
        %977 = vmatpush1.bf16.msra.mxu0 0
        %978 = vmatprep.subr.bf16.mxu0 0
        %979 = vmatpush1.bf16.msra.mxu0 0
        %980 = vmatprep.subr.bf16.mxu0 0
        %981 = vmatpush1.bf16.msra.mxu0 0
        %982 = vmatprep.subr.bf16.mxu0 0
        %983 = vmatpush1.bf16.msra.mxu0 0
        %984 = vmatprep.subr.bf16.mxu0 0
        %985 = vmatpush1.bf16.msra.mxu0 0
        %986 = vmatprep.subr.bf16.mxu0 0
        %987 = vmatpush1.bf16.msra.mxu0 0
        %988 = vmatprep.subr.bf16.mxu0 0
        %989 = vmatpush1.bf16.msra.mxu0 0
        %990 = vmatprep.subr.bf16.mxu0 0
        %991 = vmatpush1.bf16.msra.mxu0 0
        %992 = vmatprep.subr.bf16.mxu0 0
        %993 = vmatpush1.bf16.msra.mxu0 0
        %994 = vmatprep.subr.bf16.mxu0 0
        %995 = vmatpush1.bf16.msra.mxu0 0
        %996 = vmatprep.subr.bf16.mxu0 0
        %997 = vmatpush1.bf16.msra.mxu0 0
        %998 = vmatprep.subr.bf16.mxu0 0
        %999 = vmatpush1.bf16.msra.mxu0 0
        %1000 = vmatprep.subr.bf16.mxu0 0
        %1001 = vmatpush1.bf16.msra.mxu0 0
        %1002 = vmatprep.mubr.bf16.mxu0 0
        %1003 = vmatmul.mubr.bf16.gmra.mrb[0].mxu0 %v916
        %v1004 = vpop.f32.mrb[0].mxu0
        %v1005 = vadd.f32 0.0, %v1004
        %v1006 = vpop.f32.mrb[0].mxu0
        %v1007 = vpop.f32.mrb[0].mxu0
        %v1008 = vadd.f32 0.0, %v1007
        %v1009 = vpop.f32.mrb[0].mxu0
        %1010 = vdwg.mxu0
        %v1011 = vadd.f32 %v889, %v962
        %v1012 = vadd.f32 %v890, %v964
        %v1013 = vadd.f32 %v891, %v1005
        %v1014 = vadd.f32 %v892, %v966
        %v1015 = vadd.f32 %v893, %v968
        %v1016 = vadd.f32 %v894, %v1008
        %s1017 = scalar_lea.vmem %s1, 56
        %v1018 = vld [vmem:[%s1017] sm:$0xf]
        %v1019 = vld [vmem:[%s1017 + $0x4] sm:$0xf]
        %v1022 = vunpack.c.l.b16 %v1018
        %v1023 = vunpack.c.l.b16 %v1019
        %v1024 = vpack.c.b16 %v1023, %v1022
        %1025 = vrot.lane.b32.xlu0 %v189, 91
        %v1026 = vpop.permute.xlu0 %1025
        %1027 = vrot.lane.b32.xlu0 %v190, 91
        %v1028 = vpop.permute.xlu0 %1027
        %1029 = vrot.lane.b32.xlu0 %v191, 91
        %v1030 = vpop.permute.xlu0 %1029
        %1031 = vrot.lane.b32.xlu0 %v192, 91
        %v1032 = vpop.permute.xlu0 %1031
        %vm1033 = vcmask 744448
        %v1034 = vsel %vm1033, %v1026, %v1028
        %v1035 = vsel %vm1033, %v1028, %v1030
        %v1036 = vsel %vm1033, %v1030, %v1032
        %v1038 = vsel %vm205, %v1024, 0
        %v1041 = vsel %vm209, %v1034, 0
        %v1044 = vsel %vm209, %v1035, 0
        %v1047 = vsel %vm209, %v1036, 0
        %1049 = vmatprep.subr.bf16.mxu0 %v1044
        %1050 = vmatpush1.bf16.msra.mxu0 %v1041
        %1051 = vmatprep.subr.bf16.mxu0 0
        %1052 = vmatpush1.bf16.msra.mxu0 0
        %1053 = vmatprep.subr.bf16.mxu0 0
        %1054 = vmatpush1.bf16.msra.mxu0 0
        %1055 = vmatprep.subr.bf16.mxu0 0
        %1056 = vmatpush1.bf16.msra.mxu0 0
        %1057 = vmatprep.subr.bf16.mxu0 0
        %1058 = vmatpush1.bf16.msra.mxu0 0
        %1059 = vmatprep.subr.bf16.mxu0 0
        %1060 = vmatpush1.bf16.msra.mxu0 0
        %1061 = vmatprep.subr.bf16.mxu0 0
        %1062 = vmatpush1.bf16.msra.mxu0 0
        %1063 = vmatprep.subr.bf16.mxu0 0
        %1064 = vmatpush1.bf16.msra.mxu0 0
        %1065 = vmatprep.subr.bf16.mxu0 0
        %1066 = vmatpush1.bf16.msra.mxu0 0
        %1067 = vmatprep.subr.bf16.mxu0 0
        %1068 = vmatpush1.bf16.msra.mxu0 0
        %1069 = vmatprep.subr.bf16.mxu0 0
        %1070 = vmatpush1.bf16.msra.mxu0 0
        %1071 = vmatprep.subr.bf16.mxu0 0
        %1072 = vmatpush1.bf16.msra.mxu0 0
        %1073 = vmatprep.subr.bf16.mxu0 0
        %1074 = vmatpush1.bf16.msra.mxu0 0
        %1075 = vmatprep.subr.bf16.mxu0 0
        %1076 = vmatpush1.bf16.msra.mxu0 0
        %1077 = vmatprep.subr.bf16.mxu0 0
        %1078 = vmatpush1.bf16.msra.mxu0 0
        %1079 = vmatprep.subr.bf16.mxu0 0
        %1080 = vmatpush1.bf16.msra.mxu0 0
        %1081 = vmatprep.mubr.bf16.mxu0 0
        %1082 = vmatmul.mubr.bf16.gmra.mrb[0].mxu0 %v1038
        %v1083 = vpop.f32.mrb[0].mxu0
        %v1084 = vadd.f32 0.0, %v1083
        %v1085 = vpop.f32.mrb[0].mxu0
        %v1086 = vadd.f32 0.0, %v1085
        %v1087 = vpop.f32.mrb[0].mxu0
        %v1088 = vadd.f32 0.0, %v1087
        %v1089 = vpop.f32.mrb[0].mxu0
        %v1090 = vadd.f32 0.0, %v1089
        %1091 = vdwg.mxu0
        %1092 = vmatprep.subr.bf16.mxu0 0
        %1093 = vmatpush1.bf16.msra.mxu0 %v1047
        %1094 = vmatprep.subr.bf16.mxu0 0
        %1095 = vmatpush1.bf16.msra.mxu0 0
        %1096 = vmatprep.subr.bf16.mxu0 0
        %1097 = vmatpush1.bf16.msra.mxu0 0
        %1098 = vmatprep.subr.bf16.mxu0 0
        %1099 = vmatpush1.bf16.msra.mxu0 0
        %1100 = vmatprep.subr.bf16.mxu0 0
        %1101 = vmatpush1.bf16.msra.mxu0 0
        %1102 = vmatprep.subr.bf16.mxu0 0
        %1103 = vmatpush1.bf16.msra.mxu0 0
        %1104 = vmatprep.subr.bf16.mxu0 0
        %1105 = vmatpush1.bf16.msra.mxu0 0
        %1106 = vmatprep.subr.bf16.mxu0 0
        %1107 = vmatpush1.bf16.msra.mxu0 0
        %1108 = vmatprep.subr.bf16.mxu0 0
        %1109 = vmatpush1.bf16.msra.mxu0 0
        %1110 = vmatprep.subr.bf16.mxu0 0
        %1111 = vmatpush1.bf16.msra.mxu0 0
        %1112 = vmatprep.subr.bf16.mxu0 0
        %1113 = vmatpush1.bf16.msra.mxu0 0
        %1114 = vmatprep.subr.bf16.mxu0 0
        %1115 = vmatpush1.bf16.msra.mxu0 0
        %1116 = vmatprep.subr.bf16.mxu0 0
        %1117 = vmatpush1.bf16.msra.mxu0 0
        %1118 = vmatprep.subr.bf16.mxu0 0
        %1119 = vmatpush1.bf16.msra.mxu0 0
        %1120 = vmatprep.subr.bf16.mxu0 0
        %1121 = vmatpush1.bf16.msra.mxu0 0
        %1122 = vmatprep.subr.bf16.mxu0 0
        %1123 = vmatpush1.bf16.msra.mxu0 0
        %1124 = vmatprep.mubr.bf16.mxu0 0
        %1125 = vmatmul.mubr.bf16.gmra.mrb[0].mxu0 %v1038
        %v1126 = vpop.f32.mrb[0].mxu0
        %v1127 = vadd.f32 0.0, %v1126
        %v1128 = vpop.f32.mrb[0].mxu0
        %v1129 = vpop.f32.mrb[0].mxu0
        %v1130 = vadd.f32 0.0, %v1129
        %v1131 = vpop.f32.mrb[0].mxu0
        %1132 = vdwg.mxu0
        %v1133 = vadd.f32 %v1011, %v1084
        %v1134 = vadd.f32 %v1012, %v1086
        %v1135 = vadd.f32 %v1013, %v1127
        %v1136 = vadd.f32 %v1014, %v1088
        %v1137 = vadd.f32 %v1015, %v1090
        %v1138 = vadd.f32 %v1016, %v1130
        %s1139 = scalar_lea.vmem %s1, 64
        %v1140 = vld [vmem:[%s1139] sm:$0xf]
        %v1141 = vld [vmem:[%s1139 + $0x4] sm:$0xf]
        %v1144 = vunpack.c.l.b16 %v1140
        %v1145 = vunpack.c.l.b16 %v1141
        %v1146 = vpack.c.b16 %v1145, %v1144
        %1147 = vrot.lane.b32.xlu0 %v189, 90
        %v1148 = vpop.permute.xlu0 %1147
        %1149 = vrot.lane.b32.xlu0 %v190, 90
        %v1150 = vpop.permute.xlu0 %1149
        %1151 = vrot.lane.b32.xlu0 %v191, 90
        %v1152 = vpop.permute.xlu0 %1151
        %1153 = vrot.lane.b32.xlu0 %v192, 90
        %v1154 = vpop.permute.xlu0 %1153
        %vm1155 = vcmask 736256
        %v1156 = vsel %vm1155, %v1148, %v1150
        %v1157 = vsel %vm1155, %v1150, %v1152
        %v1158 = vsel %vm1155, %v1152, %v1154
        %v1160 = vsel %vm205, %v1146, 0
        %v1163 = vsel %vm209, %v1156, 0
        %v1166 = vsel %vm209, %v1157, 0
        %v1169 = vsel %vm209, %v1158, 0
        %1171 = vmatprep.subr.bf16.mxu0 %v1166
        %1172 = vmatpush1.bf16.msra.mxu0 %v1163
        %1173 = vmatprep.subr.bf16.mxu0 0
        %1174 = vmatpush1.bf16.msra.mxu0 0
        %1175 = vmatprep.subr.bf16.mxu0 0
        %1176 = vmatpush1.bf16.msra.mxu0 0
        %1177 = vmatprep.subr.bf16.mxu0 0
        %1178 = vmatpush1.bf16.msra.mxu0 0
        %1179 = vmatprep.subr.bf16.mxu0 0
        %1180 = vmatpush1.bf16.msra.mxu0 0
        %1181 = vmatprep.subr.bf16.mxu0 0
        %1182 = vmatpush1.bf16.msra.mxu0 0
        %1183 = vmatprep.subr.bf16.mxu0 0
        %1184 = vmatpush1.bf16.msra.mxu0 0
        %1185 = vmatprep.subr.bf16.mxu0 0
        %1186 = vmatpush1.bf16.msra.mxu0 0
        %1187 = vmatprep.subr.bf16.mxu0 0
        %1188 = vmatpush1.bf16.msra.mxu0 0
        %1189 = vmatprep.subr.bf16.mxu0 0
        %1190 = vmatpush1.bf16.msra.mxu0 0
        %1191 = vmatprep.subr.bf16.mxu0 0
        %1192 = vmatpush1.bf16.msra.mxu0 0
        %1193 = vmatprep.subr.bf16.mxu0 0
        %1194 = vmatpush1.bf16.msra.mxu0 0
        %1195 = vmatprep.subr.bf16.mxu0 0
        %1196 = vmatpush1.bf16.msra.mxu0 0
        %1197 = vmatprep.subr.bf16.mxu0 0
        %1198 = vmatpush1.bf16.msra.mxu0 0
        %1199 = vmatprep.subr.bf16.mxu0 0
        %1200 = vmatpush1.bf16.msra.mxu0 0
        %1201 = vmatprep.subr.bf16.mxu0 0
        %1202 = vmatpush1.bf16.msra.mxu0 0
        %1203 = vmatprep.mubr.bf16.mxu0 0
        %1204 = vmatmul.mubr.bf16.gmra.mrb[0].mxu0 %v1160
        %v1205 = vpop.f32.mrb[0].mxu0
        %v1206 = vadd.f32 0.0, %v1205
        %v1207 = vpop.f32.mrb[0].mxu0
        %v1208 = vadd.f32 0.0, %v1207
        %v1209 = vpop.f32.mrb[0].mxu0
        %v1210 = vadd.f32 0.0, %v1209
        %v1211 = vpop.f32.mrb[0].mxu0
        %v1212 = vadd.f32 0.0, %v1211
        %1213 = vdwg.mxu0
        %1214 = vmatprep.subr.bf16.mxu0 0
        %1215 = vmatpush1.bf16.msra.mxu0 %v1169
        %1216 = vmatprep.subr.bf16.mxu0 0
        %1217 = vmatpush1.bf16.msra.mxu0 0
        %1218 = vmatprep.subr.bf16.mxu0 0
        %1219 = vmatpush1.bf16.msra.mxu0 0
        %1220 = vmatprep.subr.bf16.mxu0 0
        %1221 = vmatpush1.bf16.msra.mxu0 0
        %1222 = vmatprep.subr.bf16.mxu0 0
        %1223 = vmatpush1.bf16.msra.mxu0 0
        %1224 = vmatprep.subr.bf16.mxu0 0
        %1225 = vmatpush1.bf16.msra.mxu0 0
        %1226 = vmatprep.subr.bf16.mxu0 0
        %1227 = vmatpush1.bf16.msra.mxu0 0
        %1228 = vmatprep.subr.bf16.mxu0 0
        %1229 = vmatpush1.bf16.msra.mxu0 0
        %1230 = vmatprep.subr.bf16.mxu0 0
        %1231 = vmatpush1.bf16.msra.mxu0 0
        %1232 = vmatprep.subr.bf16.mxu0 0
        %1233 = vmatpush1.bf16.msra.mxu0 0
        %1234 = vmatprep.subr.bf16.mxu0 0
        %1235 = vmatpush1.bf16.msra.mxu0 0
        %1236 = vmatprep.subr.bf16.mxu0 0
        %1237 = vmatpush1.bf16.msra.mxu0 0
        %1238 = vmatprep.subr.bf16.mxu0 0
        %1239 = vmatpush1.bf16.msra.mxu0 0
        %1240 = vmatprep.subr.bf16.mxu0 0
        %1241 = vmatpush1.bf16.msra.mxu0 0
        %1242 = vmatprep.subr.bf16.mxu0 0
        %1243 = vmatpush1.bf16.msra.mxu0 0
        %1244 = vmatprep.subr.bf16.mxu0 0
        %1245 = vmatpush1.bf16.msra.mxu0 0
        %1246 = vmatprep.mubr.bf16.mxu0 0
        %1247 = vmatmul.mubr.bf16.gmra.mrb[0].mxu0 %v1160
        %v1248 = vpop.f32.mrb[0].mxu0
        %v1249 = vadd.f32 0.0, %v1248
        %v1250 = vpop.f32.mrb[0].mxu0
        %v1251 = vpop.f32.mrb[0].mxu0
        %v1252 = vadd.f32 0.0, %v1251
        %v1253 = vpop.f32.mrb[0].mxu0
        %1254 = vdwg.mxu0
        %v1255 = vadd.f32 %v1133, %v1206
        %v1256 = vadd.f32 %v1134, %v1208
        %v1257 = vadd.f32 %v1135, %v1249
        %v1258 = vadd.f32 %v1136, %v1210
        %v1259 = vadd.f32 %v1137, %v1212
        %v1260 = vadd.f32 %v1138, %v1252
        %v1261 = vld [vmem:[%s2] sm:$0xff]
        %v1262 = vld [vmem:[%s2 + $0x8] sm:$0xff]
        %1264 = vset.pattern.permute.xlu0 0
        %1265 = vperm.xlu0 %1264, %v1261
        %v1266 = vpop.permute.xlu0 %1265
        %1269 = vset.pattern.permute.xlu0 0
        %1270 = vperm.xlu0 %1269, %v1262
        %v1271 = vpop.permute.xlu0 %1270
        %v1273 = vadd.f32 %v1255, %v1266
        %v1274 = vadd.f32 %v1256, %v1266
        %v1275 = vadd.f32 %v1257, %v1266
        %v1276 = vadd.f32 %v1258, %v1271
        %v1277 = vadd.f32 %v1259, %v1271
        %v1278 = vadd.f32 %v1260, %v1271
        %v1279 = vmax.f32 %v1273, 0.0
        %v1280 = vmax.f32 %v1274, 0.0
        %v1281 = vmax.f32 %v1275, 0.0
        %v1282 = vmax.f32 %v1276, 0.0
        %v1283 = vmax.f32 %v1277, 0.0
        %v1284 = vmax.f32 %v1278, 0.0
        %1285 = vst [vmem:[%s163] sm:$0xff] %v1279
        %1286 = vst [vmem:[%s163 + $0x8] sm:$0xff] %v1280
        %1287 = vst [vmem:[%s163 + $0x10] sm:$0xff] %v1281
        %1288 = vst [vmem:[%s163 + $0x18] sm:$0xff] %v1282
        %1289 = vst [vmem:[%s163 + $0x20] sm:$0xff] %v1283
        %1290 = vst [vmem:[%s163 + $0x28] sm:$0xff] %v1284
        %s1291 = sand.u32 %s93, 1
        %s1292 = scalar_lea.sflag [#allocation3], %s1291
        %s1293 = sand.u32 %s93, 1
        %s1294 = smul.addr %s1293, 48
        %s1295 = scalar_lea.vmem [#allocation2], %s1294
        // Predicated region
        $region33: #{tpu_custom_call.1} parent=31 // pred_check
          %p1296 = pneg %p103
        $region34: #{tpu_custom_call.1} parent=31 // pred_check_branch
          %1298 = sbr.rel (%p1296) target = $region36
        $region35: #{tpu_custom_call.1} parent=31 // pred_region
          %s1300 = ssub.s32 768, 768
          %1301 = vsyncadd %s1292, %s1300
          %s1302 = smul.addr %s17, 6
          %s1303 = smul.addr %s1302, 128
          %s1304 = scalar_lea.hbm %s3, %s1303
          %s1305 = sshll.u32 %s1295, 4
          %s1306 = int_to_ptr.vmem [resolvable:$true] %s1305
          %1311 = dma.vmem_to_hbm [thread:$0]  %s1306, 768, %s1304, %s1292, 384, 384, 24
        $region36: #{tpu_custom_call.1} parent=31 // pred_fallthru
          _
      $region32: #{tpu_custom_call.1} parent=5 // pred_fallthru
        _
      %p1312 = scmp.le.s32.totalorder 2, %s12
      // Predicated region
      $region37: #{tpu_custom_call.1} parent=5 // pred_check
        %p1313 = pneg %p1312
      $region38: #{tpu_custom_call.1} parent=5 // pred_check_branch
        %1315 = sbr.rel (%p1313) target = $region40
      $region39: #{tpu_custom_call.1} parent=5 // pred_region
        %s1316 = ssub.s32 %s12, 2
        // Predicated region
        $region41: #{tpu_custom_call.1} parent=39 // pred_check
          %p1317 = pneg %p109
        $region42: #{tpu_custom_call.1} parent=39 // pred_check_branch
          %1319 = sbr.rel (%p1317) target = $region44
        $region43: #{tpu_custom_call.1} parent=39 // pred_region
          %s1320 = sand.u32 %s94, 1
          %s1321 = scalar_lea.sflag [#allocation3], %s1320
          %s1322 = sand.u32 %s94, 1
          %s1323 = smul.addr %s1322, 48
          %s1324 = scalar_lea.vmem [#allocation2], %s1323
          %1325 = dma.done %s1321, 768
        $region44: #{tpu_custom_call.1} parent=39 // pred_fallthru
          _
      $region40: #{tpu_custom_call.1} parent=5 // pred_fallthru
        _
    $region6: #{tpu_custom_call.1} parent=1 // loop_footer
      %s16 = sadd.s32 1, %s12
    $region7: #{tpu_custom_call.1} parent=1 // loop_footer_branch
      %11 = sbr.rel target = $region3
    $region8: #{tpu_custom_call.1} parent=1 // loop_exit
      _
    %1326 = vsyncpa [#allocation3], 1
    %s1327 = scalar_lea.sflag [#allocation3], 1
    %1328 = vsyncpa %s1327, 1

</llo_original>
